<compile_context>
chip_gen: v6e
topology: v6e:2x2x1
jax: 0.10.0
libtpu: 0.0.40
codegen_flags: <defaults>
</compile_context>

<pallas_src>
import jax
import jax.numpy as jnp
from jax.experimental import pallas as pl
from jax.experimental.pallas import tpu as pltpu


def gru_chunk_kernel(x_ref, wih_ref, whh_ref, bi_ref, bhn_ref,
                     out_ref, h_scratch, gi_scratch):
    """One (B, T, H) chunk of timesteps per grid step (PyTorch gate order r,z,n)."""
    B, T, H = x_ref.shape
    c = pl.program_id(0)

    @pl.when(c == 0)
    def _():
        # PyTorch default initial hidden state is zeros.
        h_scratch[...] = jnp.zeros_like(h_scratch)

    wih = wih_ref[...]            # (H, 3H) bf16
    whh = whh_ref[...]            # (H, 3H) bf16
    bi = bi_ref[...]              # (1, 3H) f32 : b_ih with b_hh folded for r,z
    b_hn = bhn_ref[...]           # (1, H)  f32 : b_hh_n (stays inside r*(...))

    # Hoisted input projection for the whole chunk: one well-shaped matmul per
    # batch row instead of one tiny matmul per timestep on the serial path.
    for b in range(B):
        x_b = x_ref[b].astype(jnp.bfloat16)                          # (T, H)
        gi_scratch[b] = jnp.dot(
            x_b, wih, preferred_element_type=jnp.float32) + bi       # (T, 3H)

    gi = gi_scratch[...]          # (B, T, 3H) f32
    h = h_scratch[...]            # (B, H)     f32

    # Serial recurrence over time; T is small and static -> fully unrolled.
    for t in range(T):
        gh = jnp.dot(h.astype(jnp.bfloat16), whh,
                     preferred_element_type=jnp.float32)             # (B, 3H)
        gi_t = gi[:, t, :]                                           # (B, 3H)
        r = jax.nn.sigmoid(gi_t[:, 0:H] + gh[:, 0:H])
        z = jax.nn.sigmoid(gi_t[:, H:2 * H] + gh[:, H:2 * H])
        n = jnp.tanh(gi_t[:, 2 * H:3 * H] + r * (gh[:, 2 * H:3 * H] + b_hn))
        h = (1.0 - z) * n + z * h

    h_scratch[...] = h

    @pl.when(c == pl.num_programs(0) - 1)
    def _():
        out_ref[...] = h.astype(out_ref.dtype)


def question_module_forward(questions, w_ih, w_hh, b_ih, b_hh, *, t_chunk=None):
    """
    questions: (B, S, H) float32  (batch_first, like nn.GRU(batch_first=True))
    w_ih, w_hh: (3H, H); b_ih, b_hh: (3H,)   -- PyTorch parameter layout.
    Returns the final hidden state reshaped as in the torch module: (B, 1, H).
    """
    B, S, H = questions.shape
    # Whole sequence per grid step unless a clean (multiple-of-8) chunk is given.
    if t_chunk is None or t_chunk >= S or S % t_chunk != 0 or t_chunk % 8 != 0:
        t_chunk = S
    num_chunks = S // t_chunk

    # bf16 matmul operands (f32 accumulation in-kernel); halves weight DMA/VMEM.
    wih_t = jnp.transpose(w_ih).astype(jnp.bfloat16)        # (H, 3H)
    whh_t = jnp.transpose(w_hh).astype(jnp.bfloat16)        # (H, 3H)
    # Fold b_hh's r/z components into the input-side bias; b_hh_n stays separate.
    bi = jnp.concatenate([b_ih[:2 * H] + b_hh[:2 * H], b_ih[2 * H:]])
    bi = bi.reshape(1, 3 * H).astype(jnp.float32)
    b_hn = b_hh[2 * H:].reshape(1, H).astype(jnp.float32)

    h_final = pl.pallas_call(
        gru_chunk_kernel,
        out_shape=jax.ShapeDtypeStruct((B, H), jnp.float32),
        grid_spec=pltpu.PrefetchScalarGridSpec(
            num_scalar_prefetch=0,
            grid=(num_chunks,),
            in_specs=[
                # Batch-first input indexed directly (no HBM transpose copy).
                pl.BlockSpec((B, t_chunk, H), lambda c: (0, c, 0)),
                pl.BlockSpec((H, 3 * H), lambda c: (0, 0)),     # W_ih^T (bf16)
                pl.BlockSpec((H, 3 * H), lambda c: (0, 0)),     # W_hh^T (bf16)
                pl.BlockSpec((1, 3 * H), lambda c: (0, 0)),     # folded bias
                pl.BlockSpec((1, H), lambda c: (0, 0)),         # b_hh_n
            ],
            out_specs=pl.BlockSpec((B, H), lambda c: (0, 0)),
            scratch_shapes=[
                pltpu.VMEM((B, H), jnp.float32),                 # hidden carry
                pltpu.VMEM((B, t_chunk, 3 * H), jnp.float32),    # hoisted gi
            ],
        ),
        compiler_params=pltpu.CompilerParams(
            dimension_semantics=("arbitrary",)),
    )(questions, wih_t, whh_t, bi, b_hn)

    # torch: hidden is (1, B, H); .transpose(0, 1) -> (B, 1, H)
    return h_final.reshape(B, 1, H)


def gru_reference(questions, w_ih, w_hh, b_ih, b_hh):
    """Pure-JAX f32 reference matching PyTorch nn.GRU semantics."""
    B, S, H = questions.shape

    def step(h, x_t):
        gi = x_t @ w_ih.T + b_ih
        gh = h @ w_hh.T + b_hh
        i_r, i_z, i_n = jnp.split(gi, 3, axis=-1)
        h_r, h_z, h_n = jnp.split(gh, 3, axis=-1)
        r = jax.nn.sigmoid(i_r + h_r)
        z = jax.nn.sigmoid(i_z + h_z)
        n = jnp.tanh(i_n + r * h_n)
        return (1.0 - z) * n + z * h, None

    h0 = jnp.zeros((B, H), jnp.float32)
    h_final, _ = jax.lax.scan(step, h0, jnp.transpose(questions, (1, 0, 2)))
    return h_final.reshape(B, 1, H)


if __name__ == "__main__":
    B, S, H = 2, 8, 32
    key = jax.random.PRNGKey(0)
    k_x, k1, k2, k3, k4 = jax.random.split(key, 5)

    # Deterministic parameter init, matching nn.GRU's U(-1/sqrt(H), 1/sqrt(H)).
    bound = 1.0 / jnp.sqrt(jnp.float32(H))
    w_ih = jax.random.uniform(k1, (3 * H, H), jnp.float32, -bound, bound)
    w_hh = jax.random.uniform(k2, (3 * H, H), jnp.float32, -bound, bound)
    b_ih = jax.random.uniform(k3, (3 * H,), jnp.float32, -bound, bound)
    b_hh = jax.random.uniform(k4, (3 * H,), jnp.float32, -bound, bound)

    questions = jax.random.normal(k_x, (B, S, H), jnp.float32)

    out = question_module_forward(questions, w_ih, w_hh, b_ih, b_hh)
    jax.block_until_ready(out)
    assert out.shape == (B, 1, H)

    ref = gru_reference(questions, w_ih, w_hh, b_ih, b_hh)
    max_err = float(jnp.max(jnp.abs(out - ref)))
    assert jnp.allclose(out, ref, atol=2e-2, rtol=2e-2), max_err
    print("KERNEL_OK")
</pallas_src>

<mosaic_0001>
module attributes {stable_mosaic.version = 11 : i64} {
  func.func @gru_chunk_kernel(%arg0: i32, %arg1: memref<2x8x32xf32, #tpu.memory_space<vmem>>, %arg2: memref<32x96xbf16, #tpu.memory_space<vmem>>, %arg3: memref<32x96xbf16, #tpu.memory_space<vmem>>, %arg4: memref<1x96xf32, #tpu.memory_space<vmem>>, %arg5: memref<1x32xf32, #tpu.memory_space<vmem>>, %arg6: memref<2x32xf32, #tpu.memory_space<vmem>>, %arg7: memref<2x32xf32, #tpu.memory_space<vmem>>, %arg8: memref<2x8x96xf32, #tpu.memory_space<vmem>>) attributes {dimension_semantics = [#tpu.dimension_semantics<arbitrary>], iteration_bounds = array<i64: 1>, scalar_prefetch = 0 : i64, scratch_operands = 2 : i64, tpu.core_type = #tpu.core_type<tc>, window_params = [{transform_indices = @transform_0, window_bounds = array<i64: 2, 8, 32>}, {pipeline_mode = #tpu.pipeline_mode<synchronous>, transform_indices = @transform_1, window_bounds = array<i64: 32, 96>}, {pipeline_mode = #tpu.pipeline_mode<synchronous>, transform_indices = @transform_2, window_bounds = array<i64: 32, 96>}, {pipeline_mode = #tpu.pipeline_mode<synchronous>, transform_indices = @transform_3, window_bounds = array<i64: 1, 96>}, {pipeline_mode = #tpu.pipeline_mode<synchronous>, transform_indices = @transform_4, window_bounds = array<i64: 1, 32>}, {pipeline_mode = #tpu.pipeline_mode<synchronous>, transform_indices = @transform_5, window_bounds = array<i64: 2, 32>}]} {
    %c0_i32 = arith.constant 0 : i32
    %0 = arith.cmpi eq, %arg0, %c0_i32 : i32
    %1 = arith.extui %0 : i1 to i32
    %c0_i32_0 = arith.constant 0 : i32
    %2 = arith.cmpi ne, %1, %c0_i32_0 : i32
    scf.if %2 {
      %cst_61 = arith.constant 0.000000e+00 : f32
      %287 = vector.broadcast %cst_61 : f32 to vector<2x32xf32>
      %c0_62 = arith.constant 0 : index
      %c0_63 = arith.constant 0 : index
      %288 = vector.load %arg7[%c0_62, %c0_63] : memref<2x32xf32, #tpu.memory_space<vmem>>, vector<2x32xf32>
      tpu.vector_store %arg7[%c0_62, %c0_63], %287 {strides = array<i32>} : memref<2x32xf32, #tpu.memory_space<vmem>>, vector<2x32xf32>,
    } else {
    }
    %c0 = arith.constant 0 : index
    %c0_1 = arith.constant 0 : index
    %3 = vector.load %arg2[%c0, %c0_1] : memref<32x96xbf16, #tpu.memory_space<vmem>>, vector<32x96xbf16>
    %c0_2 = arith.constant 0 : index
    %c0_3 = arith.constant 0 : index
    %4 = vector.load %arg3[%c0_2, %c0_3] : memref<32x96xbf16, #tpu.memory_space<vmem>>, vector<32x96xbf16>
    %c0_4 = arith.constant 0 : index
    %c0_5 = arith.constant 0 : index
    %5 = vector.load %arg4[%c0_4, %c0_5] : memref<1x96xf32, #tpu.memory_space<vmem>>, vector<1x96xf32>
    %c0_6 = arith.constant 0 : index
    %c0_7 = arith.constant 0 : index
    %6 = vector.load %arg5[%c0_6, %c0_7] : memref<1x32xf32, #tpu.memory_space<vmem>>, vector<1x32xf32>
    %c0_8 = arith.constant 0 : index
    %c0_9 = arith.constant 0 : index
    %c0_10 = arith.constant 0 : index
    %7 = vector.load %arg1[%c0_8, %c0_9, %c0_10] : memref<2x8x32xf32, #tpu.memory_space<vmem>>, vector<1x8x32xf32>
    %8 = vector.shape_cast %7 : vector<1x8x32xf32> to vector<8x32xf32>
    %9 = arith.truncf %8 : vector<8x32xf32> to vector<8x32xbf16>
    %cst = arith.constant dense<0.000000e+00> : vector<8x96xf32>
    %10 = tpu.matmul %9, %3, %cst {dimension_numbers = #tpu.dot_dimension_numbers<[1], [0], [0], [1], [0, 0, 1, 1], [], []>} : vector<8x32xbf16>, vector<32x96xbf16>, vector<8x96xf32> -> vector<8x96xf32>
    %11 = vector.broadcast %5 : vector<1x96xf32> to vector<8x96xf32>
    %12 = arith.addf %10, %11 : vector<8x96xf32>
    %c0_11 = arith.constant 0 : index
    %c0_12 = arith.constant 0 : index
    %c0_13 = arith.constant 0 : index
    %13 = vector.load %arg8[%c0_11, %c0_12, %c0_13] : memref<2x8x96xf32, #tpu.memory_space<vmem>>, vector<1x8x96xf32>
    %14 = vector.shape_cast %13 : vector<1x8x96xf32> to vector<8x96xf32>
    %15 = vector.shape_cast %12 : vector<8x96xf32> to vector<1x8x96xf32>
    tpu.vector_store %arg8[%c0_11, %c0_12, %c0_13], %15 {strides = array<i32>} : memref<2x8x96xf32, #tpu.memory_space<vmem>>, vector<1x8x96xf32>,
    %c1 = arith.constant 1 : index
    %c0_14 = arith.constant 0 : index
    %c0_15 = arith.constant 0 : index
    %16 = vector.load %arg1[%c1, %c0_14, %c0_15] : memref<2x8x32xf32, #tpu.memory_space<vmem>>, vector<1x8x32xf32>
    %17 = vector.shape_cast %16 : vector<1x8x32xf32> to vector<8x32xf32>
    %18 = arith.truncf %17 : vector<8x32xf32> to vector<8x32xbf16>
    %cst_16 = arith.constant dense<0.000000e+00> : vector<8x96xf32>
    %19 = tpu.matmul %18, %3, %cst_16 {dimension_numbers = #tpu.dot_dimension_numbers<[1], [0], [0], [1], [0, 0, 1, 1], [], []>} : vector<8x32xbf16>, vector<32x96xbf16>, vector<8x96xf32> -> vector<8x96xf32>
    %20 = vector.broadcast %5 : vector<1x96xf32> to vector<8x96xf32>
    %21 = arith.addf %19, %20 : vector<8x96xf32>
    %c1_17 = arith.constant 1 : index
    %c0_18 = arith.constant 0 : index
    %c0_19 = arith.constant 0 : index
    %22 = vector.load %arg8[%c1_17, %c0_18, %c0_19] : memref<2x8x96xf32, #tpu.memory_space<vmem>>, vector<1x8x96xf32>
    %23 = vector.shape_cast %22 : vector<1x8x96xf32> to vector<8x96xf32>
    %24 = vector.shape_cast %21 : vector<8x96xf32> to vector<1x8x96xf32>
    tpu.vector_store %arg8[%c1_17, %c0_18, %c0_19], %24 {strides = array<i32>} : memref<2x8x96xf32, #tpu.memory_space<vmem>>, vector<1x8x96xf32>,
    %c0_20 = arith.constant 0 : index
    %c0_21 = arith.constant 0 : index
    %c0_22 = arith.constant 0 : index
    %25 = vector.load %arg8[%c0_20, %c0_21, %c0_22] : memref<2x8x96xf32, #tpu.memory_space<vmem>>, vector<2x8x96xf32>
    %c0_23 = arith.constant 0 : index
    %c0_24 = arith.constant 0 : index
    %26 = vector.load %arg7[%c0_23, %c0_24] : memref<2x32xf32, #tpu.memory_space<vmem>>, vector<2x32xf32>
    %27 = arith.truncf %26 : vector<2x32xf32> to vector<2x32xbf16>
    %cst_25 = arith.constant dense<0.000000e+00> : vector<2x96xf32>
    %28 = tpu.matmul %27, %4, %cst_25 {dimension_numbers = #tpu.dot_dimension_numbers<[1], [0], [0], [1], [0, 0, 1, 1], [], []>} : vector<2x32xbf16>, vector<32x96xbf16>, vector<2x96xf32> -> vector<2x96xf32>
    %29 = vector.extract_strided_slice %25 {offsets = [0, 0, 0], sizes = [2, 1, 96], strides = [1, 1, 1]} : vector<2x8x96xf32> to vector<2x1x96xf32>
    %30 = vector.shape_cast %29 : vector<2x1x96xf32> to vector<2x96xf32>
    %31 = vector.extract_strided_slice %30 {offsets = [0, 0], sizes = [2, 32], strides = [1, 1]} : vector<2x96xf32> to vector<2x32xf32>
    %32 = vector.extract_strided_slice %28 {offsets = [0, 0], sizes = [2, 32], strides = [1, 1]} : vector<2x96xf32> to vector<2x32xf32>
    %33 = arith.addf %31, %32 : vector<2x32xf32>
    %34 = arith.negf %33 : vector<2x32xf32>
    %35 = math.exp %34 : vector<2x32xf32>
    %cst_26 = arith.constant 1.000000e+00 : f32
    %36 = vector.broadcast %cst_26 : f32 to vector<2x32xf32>
    %37 = arith.addf %36, %35 : vector<2x32xf32>
    %38 = arith.divf %36, %37 : vector<2x32xf32>
    %39 = vector.extract_strided_slice %30 {offsets = [0, 32], sizes = [2, 32], strides = [1, 1]} : vector<2x96xf32> to vector<2x32xf32>
    %40 = vector.extract_strided_slice %28 {offsets = [0, 32], sizes = [2, 32], strides = [1, 1]} : vector<2x96xf32> to vector<2x32xf32>
    %41 = arith.addf %39, %40 : vector<2x32xf32>
    %42 = arith.negf %41 : vector<2x32xf32>
    %43 = math.exp %42 : vector<2x32xf32>
    %cst_27 = arith.constant 1.000000e+00 : f32
    %44 = vector.broadcast %cst_27 : f32 to vector<2x32xf32>
    %45 = arith.addf %44, %43 : vector<2x32xf32>
    %46 = arith.divf %44, %45 : vector<2x32xf32>
    %47 = vector.extract_strided_slice %30 {offsets = [0, 64], sizes = [2, 32], strides = [1, 1]} : vector<2x96xf32> to vector<2x32xf32>
    %48 = vector.extract_strided_slice %28 {offsets = [0, 64], sizes = [2, 32], strides = [1, 1]} : vector<2x96xf32> to vector<2x32xf32>
    %49 = vector.broadcast %6 : vector<1x32xf32> to vector<2x32xf32>
    %50 = arith.addf %48, %49 : vector<2x32xf32>
    %51 = arith.mulf %38, %50 : vector<2x32xf32>
    %52 = arith.addf %47, %51 : vector<2x32xf32>
    %53 = math.tanh %52 : vector<2x32xf32>
    %cst_28 = arith.constant 1.000000e+00 : f32
    %54 = vector.broadcast %cst_28 : f32 to vector<2x32xf32>
    %55 = arith.subf %54, %46 : vector<2x32xf32>
    %56 = arith.mulf %55, %53 : vector<2x32xf32>
    %57 = arith.mulf %46, %26 : vector<2x32xf32>
    %58 = arith.addf %56, %57 : vector<2x32xf32>
    %59 = arith.truncf %58 : vector<2x32xf32> to vector<2x32xbf16>
    %cst_29 = arith.constant dense<0.000000e+00> : vector<2x96xf32>
    %60 = tpu.matmul %59, %4, %cst_29 {dimension_numbers = #tpu.dot_dimension_numbers<[1], [0], [0], [1], [0, 0, 1, 1], [], []>} : vector<2x32xbf16>, vector<32x96xbf16>, vector<2x96xf32> -> vector<2x96xf32>
    %61 = vector.extract_strided_slice %25 {offsets = [0, 1, 0], sizes = [2, 1, 96], strides = [1, 1, 1]} : vector<2x8x96xf32> to vector<2x1x96xf32>
    %62 = vector.shape_cast %61 : vector<2x1x96xf32> to vector<2x96xf32>
    %63 = vector.extract_strided_slice %62 {offsets = [0, 0], sizes = [2, 32], strides = [1, 1]} : vector<2x96xf32> to vector<2x32xf32>
    %64 = vector.extract_strided_slice %60 {offsets = [0, 0], sizes = [2, 32], strides = [1, 1]} : vector<2x96xf32> to vector<2x32xf32>
    %65 = arith.addf %63, %64 : vector<2x32xf32>
    %66 = arith.negf %65 : vector<2x32xf32>
    %67 = math.exp %66 : vector<2x32xf32>
    %cst_30 = arith.constant 1.000000e+00 : f32
    %68 = vector.broadcast %cst_30 : f32 to vector<2x32xf32>
    %69 = arith.addf %68, %67 : vector<2x32xf32>
    %70 = arith.divf %68, %69 : vector<2x32xf32>
    %71 = vector.extract_strided_slice %62 {offsets = [0, 32], sizes = [2, 32], strides = [1, 1]} : vector<2x96xf32> to vector<2x32xf32>
    %72 = vector.extract_strided_slice %60 {offsets = [0, 32], sizes = [2, 32], strides = [1, 1]} : vector<2x96xf32> to vector<2x32xf32>
    %73 = arith.addf %71, %72 : vector<2x32xf32>
    %74 = arith.negf %73 : vector<2x32xf32>
    %75 = math.exp %74 : vector<2x32xf32>
    %cst_31 = arith.constant 1.000000e+00 : f32
    %76 = vector.broadcast %cst_31 : f32 to vector<2x32xf32>
    %77 = arith.addf %76, %75 : vector<2x32xf32>
    %78 = arith.divf %76, %77 : vector<2x32xf32>
    %79 = vector.extract_strided_slice %62 {offsets = [0, 64], sizes = [2, 32], strides = [1, 1]} : vector<2x96xf32> to vector<2x32xf32>
    %80 = vector.extract_strided_slice %60 {offsets = [0, 64], sizes = [2, 32], strides = [1, 1]} : vector<2x96xf32> to vector<2x32xf32>
    %81 = vector.broadcast %6 : vector<1x32xf32> to vector<2x32xf32>
    %82 = arith.addf %80, %81 : vector<2x32xf32>
    %83 = arith.mulf %70, %82 : vector<2x32xf32>
    %84 = arith.addf %79, %83 : vector<2x32xf32>
    %85 = math.tanh %84 : vector<2x32xf32>
    %cst_32 = arith.constant 1.000000e+00 : f32
    %86 = vector.broadcast %cst_32 : f32 to vector<2x32xf32>
    %87 = arith.subf %86, %78 : vector<2x32xf32>
    %88 = arith.mulf %87, %85 : vector<2x32xf32>
    %89 = arith.mulf %78, %58 : vector<2x32xf32>
    %90 = arith.addf %88, %89 : vector<2x32xf32>
    %91 = arith.truncf %90 : vector<2x32xf32> to vector<2x32xbf16>
    %cst_33 = arith.constant dense<0.000000e+00> : vector<2x96xf32>
    %92 = tpu.matmul %91, %4, %cst_33 {dimension_numbers = #tpu.dot_dimension_numbers<[1], [0], [0], [1], [0, 0, 1, 1], [], []>} : vector<2x32xbf16>, vector<32x96xbf16>, vector<2x96xf32> -> vector<2x96xf32>
    %93 = vector.extract_strided_slice %25 {offsets = [0, 2, 0], sizes = [2, 1, 96], strides = [1, 1, 1]} : vector<2x8x96xf32> to vector<2x1x96xf32>
    %94 = vector.shape_cast %93 : vector<2x1x96xf32> to vector<2x96xf32>
    %95 = vector.extract_strided_slice %94 {offsets = [0, 0], sizes = [2, 32], strides = [1, 1]} : vector<2x96xf32> to vector<2x32xf32>
    %96 = vector.extract_strided_slice %92 {offsets = [0, 0], sizes = [2, 32], strides = [1, 1]} : vector<2x96xf32> to vector<2x32xf32>
    %97 = arith.addf %95, %96 : vector<2x32xf32>
    %98 = arith.negf %97 : vector<2x32xf32>
    %99 = math.exp %98 : vector<2x32xf32>
    %cst_34 = arith.constant 1.000000e+00 : f32
    %100 = vector.broadcast %cst_34 : f32 to vector<2x32xf32>
    %101 = arith.addf %100, %99 : vector<2x32xf32>
    %102 = arith.divf %100, %101 : vector<2x32xf32>
    %103 = vector.extract_strided_slice %94 {offsets = [0, 32], sizes = [2, 32], strides = [1, 1]} : vector<2x96xf32> to vector<2x32xf32>
    %104 = vector.extract_strided_slice %92 {offsets = [0, 32], sizes = [2, 32], strides = [1, 1]} : vector<2x96xf32> to vector<2x32xf32>
    %105 = arith.addf %103, %104 : vector<2x32xf32>
    %106 = arith.negf %105 : vector<2x32xf32>
    %107 = math.exp %106 : vector<2x32xf32>
    %cst_35 = arith.constant 1.000000e+00 : f32
    %108 = vector.broadcast %cst_35 : f32 to vector<2x32xf32>
    %109 = arith.addf %108, %107 : vector<2x32xf32>
    %110 = arith.divf %108, %109 : vector<2x32xf32>
    %111 = vector.extract_strided_slice %94 {offsets = [0, 64], sizes = [2, 32], strides = [1, 1]} : vector<2x96xf32> to vector<2x32xf32>
    %112 = vector.extract_strided_slice %92 {offsets = [0, 64], sizes = [2, 32], strides = [1, 1]} : vector<2x96xf32> to vector<2x32xf32>
    %113 = vector.broadcast %6 : vector<1x32xf32> to vector<2x32xf32>
    %114 = arith.addf %112, %113 : vector<2x32xf32>
    %115 = arith.mulf %102, %114 : vector<2x32xf32>
    %116 = arith.addf %111, %115 : vector<2x32xf32>
    %117 = math.tanh %116 : vector<2x32xf32>
    %cst_36 = arith.constant 1.000000e+00 : f32
    %118 = vector.broadcast %cst_36 : f32 to vector<2x32xf32>
    %119 = arith.subf %118, %110 : vector<2x32xf32>
    %120 = arith.mulf %119, %117 : vector<2x32xf32>
    %121 = arith.mulf %110, %90 : vector<2x32xf32>
    %122 = arith.addf %120, %121 : vector<2x32xf32>
    %123 = arith.truncf %122 : vector<2x32xf32> to vector<2x32xbf16>
    %cst_37 = arith.constant dense<0.000000e+00> : vector<2x96xf32>
    %124 = tpu.matmul %123, %4, %cst_37 {dimension_numbers = #tpu.dot_dimension_numbers<[1], [0], [0], [1], [0, 0, 1, 1], [], []>} : vector<2x32xbf16>, vector<32x96xbf16>, vector<2x96xf32> -> vector<2x96xf32>
    %125 = vector.extract_strided_slice %25 {offsets = [0, 3, 0], sizes = [2, 1, 96], strides = [1, 1, 1]} : vector<2x8x96xf32> to vector<2x1x96xf32>
    %126 = vector.shape_cast %125 : vector<2x1x96xf32> to vector<2x96xf32>
    %127 = vector.extract_strided_slice %126 {offsets = [0, 0], sizes = [2, 32], strides = [1, 1]} : vector<2x96xf32> to vector<2x32xf32>
    %128 = vector.extract_strided_slice %124 {offsets = [0, 0], sizes = [2, 32], strides = [1, 1]} : vector<2x96xf32> to vector<2x32xf32>
    %129 = arith.addf %127, %128 : vector<2x32xf32>
    %130 = arith.negf %129 : vector<2x32xf32>
    %131 = math.exp %130 : vector<2x32xf32>
    %cst_38 = arith.constant 1.000000e+00 : f32
    %132 = vector.broadcast %cst_38 : f32 to vector<2x32xf32>
    %133 = arith.addf %132, %131 : vector<2x32xf32>
    %134 = arith.divf %132, %133 : vector<2x32xf32>
    %135 = vector.extract_strided_slice %126 {offsets = [0, 32], sizes = [2, 32], strides = [1, 1]} : vector<2x96xf32> to vector<2x32xf32>
    %136 = vector.extract_strided_slice %124 {offsets = [0, 32], sizes = [2, 32], strides = [1, 1]} : vector<2x96xf32> to vector<2x32xf32>
    %137 = arith.addf %135, %136 : vector<2x32xf32>
    %138 = arith.negf %137 : vector<2x32xf32>
    %139 = math.exp %138 : vector<2x32xf32>
    %cst_39 = arith.constant 1.000000e+00 : f32
    %140 = vector.broadcast %cst_39 : f32 to vector<2x32xf32>
    %141 = arith.addf %140, %139 : vector<2x32xf32>
    %142 = arith.divf %140, %141 : vector<2x32xf32>
    %143 = vector.extract_strided_slice %126 {offsets = [0, 64], sizes = [2, 32], strides = [1, 1]} : vector<2x96xf32> to vector<2x32xf32>
    %144 = vector.extract_strided_slice %124 {offsets = [0, 64], sizes = [2, 32], strides = [1, 1]} : vector<2x96xf32> to vector<2x32xf32>
    %145 = vector.broadcast %6 : vector<1x32xf32> to vector<2x32xf32>
    %146 = arith.addf %144, %145 : vector<2x32xf32>
    %147 = arith.mulf %134, %146 : vector<2x32xf32>
    %148 = arith.addf %143, %147 : vector<2x32xf32>
    %149 = math.tanh %148 : vector<2x32xf32>
    %cst_40 = arith.constant 1.000000e+00 : f32
    %150 = vector.broadcast %cst_40 : f32 to vector<2x32xf32>
    %151 = arith.subf %150, %142 : vector<2x32xf32>
    %152 = arith.mulf %151, %149 : vector<2x32xf32>
    %153 = arith.mulf %142, %122 : vector<2x32xf32>
    %154 = arith.addf %152, %153 : vector<2x32xf32>
    %155 = arith.truncf %154 : vector<2x32xf32> to vector<2x32xbf16>
    %cst_41 = arith.constant dense<0.000000e+00> : vector<2x96xf32>
    %156 = tpu.matmul %155, %4, %cst_41 {dimension_numbers = #tpu.dot_dimension_numbers<[1], [0], [0], [1], [0, 0, 1, 1], [], []>} : vector<2x32xbf16>, vector<32x96xbf16>, vector<2x96xf32> -> vector<2x96xf32>
    %157 = vector.extract_strided_slice %25 {offsets = [0, 4, 0], sizes = [2, 1, 96], strides = [1, 1, 1]} : vector<2x8x96xf32> to vector<2x1x96xf32>
    %158 = vector.shape_cast %157 : vector<2x1x96xf32> to vector<2x96xf32>
    %159 = vector.extract_strided_slice %158 {offsets = [0, 0], sizes = [2, 32], strides = [1, 1]} : vector<2x96xf32> to vector<2x32xf32>
    %160 = vector.extract_strided_slice %156 {offsets = [0, 0], sizes = [2, 32], strides = [1, 1]} : vector<2x96xf32> to vector<2x32xf32>
    %161 = arith.addf %159, %160 : vector<2x32xf32>
    %162 = arith.negf %161 : vector<2x32xf32>
    %163 = math.exp %162 : vector<2x32xf32>
    %cst_42 = arith.constant 1.000000e+00 : f32
    %164 = vector.broadcast %cst_42 : f32 to vector<2x32xf32>
    %165 = arith.addf %164, %163 : vector<2x32xf32>
    %166 = arith.divf %164, %165 : vector<2x32xf32>
    %167 = vector.extract_strided_slice %158 {offsets = [0, 32], sizes = [2, 32], strides = [1, 1]} : vector<2x96xf32> to vector<2x32xf32>
    %168 = vector.extract_strided_slice %156 {offsets = [0, 32], sizes = [2, 32], strides = [1, 1]} : vector<2x96xf32> to vector<2x32xf32>
    %169 = arith.addf %167, %168 : vector<2x32xf32>
    %170 = arith.negf %169 : vector<2x32xf32>
    %171 = math.exp %170 : vector<2x32xf32>
    %cst_43 = arith.constant 1.000000e+00 : f32
    %172 = vector.broadcast %cst_43 : f32 to vector<2x32xf32>
    %173 = arith.addf %172, %171 : vector<2x32xf32>
    %174 = arith.divf %172, %173 : vector<2x32xf32>
    %175 = vector.extract_strided_slice %158 {offsets = [0, 64], sizes = [2, 32], strides = [1, 1]} : vector<2x96xf32> to vector<2x32xf32>
    %176 = vector.extract_strided_slice %156 {offsets = [0, 64], sizes = [2, 32], strides = [1, 1]} : vector<2x96xf32> to vector<2x32xf32>
    %177 = vector.broadcast %6 : vector<1x32xf32> to vector<2x32xf32>
    %178 = arith.addf %176, %177 : vector<2x32xf32>
    %179 = arith.mulf %166, %178 : vector<2x32xf32>
    %180 = arith.addf %175, %179 : vector<2x32xf32>
    %181 = math.tanh %180 : vector<2x32xf32>
    %cst_44 = arith.constant 1.000000e+00 : f32
    %182 = vector.broadcast %cst_44 : f32 to vector<2x32xf32>
    %183 = arith.subf %182, %174 : vector<2x32xf32>
    %184 = arith.mulf %183, %181 : vector<2x32xf32>
    %185 = arith.mulf %174, %154 : vector<2x32xf32>
    %186 = arith.addf %184, %185 : vector<2x32xf32>
    %187 = arith.truncf %186 : vector<2x32xf32> to vector<2x32xbf16>
    %cst_45 = arith.constant dense<0.000000e+00> : vector<2x96xf32>
    %188 = tpu.matmul %187, %4, %cst_45 {dimension_numbers = #tpu.dot_dimension_numbers<[1], [0], [0], [1], [0, 0, 1, 1], [], []>} : vector<2x32xbf16>, vector<32x96xbf16>, vector<2x96xf32> -> vector<2x96xf32>
    %189 = vector.extract_strided_slice %25 {offsets = [0, 5, 0], sizes = [2, 1, 96], strides = [1, 1, 1]} : vector<2x8x96xf32> to vector<2x1x96xf32>
    %190 = vector.shape_cast %189 : vector<2x1x96xf32> to vector<2x96xf32>
    %191 = vector.extract_strided_slice %190 {offsets = [0, 0], sizes = [2, 32], strides = [1, 1]} : vector<2x96xf32> to vector<2x32xf32>
    %192 = vector.extract_strided_slice %188 {offsets = [0, 0], sizes = [2, 32], strides = [1, 1]} : vector<2x96xf32> to vector<2x32xf32>
    %193 = arith.addf %191, %192 : vector<2x32xf32>
    %194 = arith.negf %193 : vector<2x32xf32>
    %195 = math.exp %194 : vector<2x32xf32>
    %cst_46 = arith.constant 1.000000e+00 : f32
    %196 = vector.broadcast %cst_46 : f32 to vector<2x32xf32>
    %197 = arith.addf %196, %195 : vector<2x32xf32>
    %198 = arith.divf %196, %197 : vector<2x32xf32>
    %199 = vector.extract_strided_slice %190 {offsets = [0, 32], sizes = [2, 32], strides = [1, 1]} : vector<2x96xf32> to vector<2x32xf32>
    %200 = vector.extract_strided_slice %188 {offsets = [0, 32], sizes = [2, 32], strides = [1, 1]} : vector<2x96xf32> to vector<2x32xf32>
    %201 = arith.addf %199, %200 : vector<2x32xf32>
    %202 = arith.negf %201 : vector<2x32xf32>
    %203 = math.exp %202 : vector<2x32xf32>
    %cst_47 = arith.constant 1.000000e+00 : f32
    %204 = vector.broadcast %cst_47 : f32 to vector<2x32xf32>
    %205 = arith.addf %204, %203 : vector<2x32xf32>
    %206 = arith.divf %204, %205 : vector<2x32xf32>
    %207 = vector.extract_strided_slice %190 {offsets = [0, 64], sizes = [2, 32], strides = [1, 1]} : vector<2x96xf32> to vector<2x32xf32>
    %208 = vector.extract_strided_slice %188 {offsets = [0, 64], sizes = [2, 32], strides = [1, 1]} : vector<2x96xf32> to vector<2x32xf32>
    %209 = vector.broadcast %6 : vector<1x32xf32> to vector<2x32xf32>
    %210 = arith.addf %208, %209 : vector<2x32xf32>
    %211 = arith.mulf %198, %210 : vector<2x32xf32>
    %212 = arith.addf %207, %211 : vector<2x32xf32>
    %213 = math.tanh %212 : vector<2x32xf32>
    %cst_48 = arith.constant 1.000000e+00 : f32
    %214 = vector.broadcast %cst_48 : f32 to vector<2x32xf32>
    %215 = arith.subf %214, %206 : vector<2x32xf32>
    %216 = arith.mulf %215, %213 : vector<2x32xf32>
    %217 = arith.mulf %206, %186 : vector<2x32xf32>
    %218 = arith.addf %216, %217 : vector<2x32xf32>
    %219 = arith.truncf %218 : vector<2x32xf32> to vector<2x32xbf16>
    %cst_49 = arith.constant dense<0.000000e+00> : vector<2x96xf32>
    %220 = tpu.matmul %219, %4, %cst_49 {dimension_numbers = #tpu.dot_dimension_numbers<[1], [0], [0], [1], [0, 0, 1, 1], [], []>} : vector<2x32xbf16>, vector<32x96xbf16>, vector<2x96xf32> -> vector<2x96xf32>
    %221 = vector.extract_strided_slice %25 {offsets = [0, 6, 0], sizes = [2, 1, 96], strides = [1, 1, 1]} : vector<2x8x96xf32> to vector<2x1x96xf32>
    %222 = vector.shape_cast %221 : vector<2x1x96xf32> to vector<2x96xf32>
    %223 = vector.extract_strided_slice %222 {offsets = [0, 0], sizes = [2, 32], strides = [1, 1]} : vector<2x96xf32> to vector<2x32xf32>
    %224 = vector.extract_strided_slice %220 {offsets = [0, 0], sizes = [2, 32], strides = [1, 1]} : vector<2x96xf32> to vector<2x32xf32>
    %225 = arith.addf %223, %224 : vector<2x32xf32>
    %226 = arith.negf %225 : vector<2x32xf32>
    %227 = math.exp %226 : vector<2x32xf32>
    %cst_50 = arith.constant 1.000000e+00 : f32
    %228 = vector.broadcast %cst_50 : f32 to vector<2x32xf32>
    %229 = arith.addf %228, %227 : vector<2x32xf32>
    %230 = arith.divf %228, %229 : vector<2x32xf32>
    %231 = vector.extract_strided_slice %222 {offsets = [0, 32], sizes = [2, 32], strides = [1, 1]} : vector<2x96xf32> to vector<2x32xf32>
    %232 = vector.extract_strided_slice %220 {offsets = [0, 32], sizes = [2, 32], strides = [1, 1]} : vector<2x96xf32> to vector<2x32xf32>
    %233 = arith.addf %231, %232 : vector<2x32xf32>
    %234 = arith.negf %233 : vector<2x32xf32>
    %235 = math.exp %234 : vector<2x32xf32>
    %cst_51 = arith.constant 1.000000e+00 : f32
    %236 = vector.broadcast %cst_51 : f32 to vector<2x32xf32>
    %237 = arith.addf %236, %235 : vector<2x32xf32>
    %238 = arith.divf %236, %237 : vector<2x32xf32>
    %239 = vector.extract_strided_slice %222 {offsets = [0, 64], sizes = [2, 32], strides = [1, 1]} : vector<2x96xf32> to vector<2x32xf32>
    %240 = vector.extract_strided_slice %220 {offsets = [0, 64], sizes = [2, 32], strides = [1, 1]} : vector<2x96xf32> to vector<2x32xf32>
    %241 = vector.broadcast %6 : vector<1x32xf32> to vector<2x32xf32>
    %242 = arith.addf %240, %241 : vector<2x32xf32>
    %243 = arith.mulf %230, %242 : vector<2x32xf32>
    %244 = arith.addf %239, %243 : vector<2x32xf32>
    %245 = math.tanh %244 : vector<2x32xf32>
    %cst_52 = arith.constant 1.000000e+00 : f32
    %246 = vector.broadcast %cst_52 : f32 to vector<2x32xf32>
    %247 = arith.subf %246, %238 : vector<2x32xf32>
    %248 = arith.mulf %247, %245 : vector<2x32xf32>
    %249 = arith.mulf %238, %218 : vector<2x32xf32>
    %250 = arith.addf %248, %249 : vector<2x32xf32>
    %251 = arith.truncf %250 : vector<2x32xf32> to vector<2x32xbf16>
    %cst_53 = arith.constant dense<0.000000e+00> : vector<2x96xf32>
    %252 = tpu.matmul %251, %4, %cst_53 {dimension_numbers = #tpu.dot_dimension_numbers<[1], [0], [0], [1], [0, 0, 1, 1], [], []>} : vector<2x32xbf16>, vector<32x96xbf16>, vector<2x96xf32> -> vector<2x96xf32>
    %253 = vector.extract_strided_slice %25 {offsets = [0, 7, 0], sizes = [2, 1, 96], strides = [1, 1, 1]} : vector<2x8x96xf32> to vector<2x1x96xf32>
    %254 = vector.shape_cast %253 : vector<2x1x96xf32> to vector<2x96xf32>
    %255 = vector.extract_strided_slice %254 {offsets = [0, 0], sizes = [2, 32], strides = [1, 1]} : vector<2x96xf32> to vector<2x32xf32>
    %256 = vector.extract_strided_slice %252 {offsets = [0, 0], sizes = [2, 32], strides = [1, 1]} : vector<2x96xf32> to vector<2x32xf32>
    %257 = arith.addf %255, %256 : vector<2x32xf32>
    %258 = arith.negf %257 : vector<2x32xf32>
    %259 = math.exp %258 : vector<2x32xf32>
    %cst_54 = arith.constant 1.000000e+00 : f32
    %260 = vector.broadcast %cst_54 : f32 to vector<2x32xf32>
    %261 = arith.addf %260, %259 : vector<2x32xf32>
    %262 = arith.divf %260, %261 : vector<2x32xf32>
    %263 = vector.extract_strided_slice %254 {offsets = [0, 32], sizes = [2, 32], strides = [1, 1]} : vector<2x96xf32> to vector<2x32xf32>
    %264 = vector.extract_strided_slice %252 {offsets = [0, 32], sizes = [2, 32], strides = [1, 1]} : vector<2x96xf32> to vector<2x32xf32>
    %265 = arith.addf %263, %264 : vector<2x32xf32>
    %266 = arith.negf %265 : vector<2x32xf32>
    %267 = math.exp %266 : vector<2x32xf32>
    %cst_55 = arith.constant 1.000000e+00 : f32
    %268 = vector.broadcast %cst_55 : f32 to vector<2x32xf32>
    %269 = arith.addf %268, %267 : vector<2x32xf32>
    %270 = arith.divf %268, %269 : vector<2x32xf32>
    %271 = vector.extract_strided_slice %254 {offsets = [0, 64], sizes = [2, 32], strides = [1, 1]} : vector<2x96xf32> to vector<2x32xf32>
    %272 = vector.extract_strided_slice %252 {offsets = [0, 64], sizes = [2, 32], strides = [1, 1]} : vector<2x96xf32> to vector<2x32xf32>
    %273 = vector.broadcast %6 : vector<1x32xf32> to vector<2x32xf32>
    %274 = arith.addf %272, %273 : vector<2x32xf32>
    %275 = arith.mulf %262, %274 : vector<2x32xf32>
    %276 = arith.addf %271, %275 : vector<2x32xf32>
    %277 = math.tanh %276 : vector<2x32xf32>
    %cst_56 = arith.constant 1.000000e+00 : f32
    %278 = vector.broadcast %cst_56 : f32 to vector<2x32xf32>
    %279 = arith.subf %278, %270 : vector<2x32xf32>
    %280 = arith.mulf %279, %277 : vector<2x32xf32>
    %281 = arith.mulf %270, %250 : vector<2x32xf32>
    %282 = arith.addf %280, %281 : vector<2x32xf32>
    %c0_57 = arith.constant 0 : index
    %c0_58 = arith.constant 0 : index
    %283 = vector.load %arg7[%c0_57, %c0_58] : memref<2x32xf32, #tpu.memory_space<vmem>>, vector<2x32xf32>
    tpu.vector_store %arg7[%c0_57, %c0_58], %282 {strides = array<i32>} : memref<2x32xf32, #tpu.memory_space<vmem>>, vector<2x32xf32>,
    %c0_i32_59 = arith.constant 0 : i32
    %284 = arith.cmpi eq, %arg0, %c0_i32_59 : i32
    %285 = arith.extui %284 : i1 to i32
    %c0_i32_60 = arith.constant 0 : i32
    %286 = arith.cmpi ne, %285, %c0_i32_60 : i32
    scf.if %286 {
      %c0_61 = arith.constant 0 : index
      %c0_62 = arith.constant 0 : index
      %287 = vector.load %arg6[%c0_61, %c0_62] : memref<2x32xf32, #tpu.memory_space<vmem>>, vector<2x32xf32>
      tpu.vector_store %arg6[%c0_61, %c0_62], %282 {strides = array<i32>} : memref<2x32xf32, #tpu.memory_space<vmem>>, vector<2x32xf32>,
    } else {
    }
    return
  }
  func.func @transform_0(%arg0: i32) -> (i32, i32, i32) {
    %c0_i32 = arith.constant 0 : i32
    %c0_i32_0 = arith.constant 0 : i32
    %c0_i32_1 = arith.constant 0 : i32
    return %c0_i32, %arg0, %c0_i32_0 : i32, i32, i32
  }
  func.func @transform_1(%arg0: i32) -> (i32, i32) {
    %c0_i32 = arith.constant 0 : i32
    %c0_i32_0 = arith.constant 0 : i32
    %c0_i32_1 = arith.constant 0 : i32
    return %c0_i32, %c0_i32_0 : i32, i32
  }
  func.func @transform_2(%arg0: i32) -> (i32, i32) {
    %c0_i32 = arith.constant 0 : i32
    %c0_i32_0 = arith.constant 0 : i32
    %c0_i32_1 = arith.constant 0 : i32
    return %c0_i32, %c0_i32_0 : i32, i32
  }
  func.func @transform_3(%arg0: i32) -> (i32, i32) {
    %c0_i32 = arith.constant 0 : i32
    %c0_i32_0 = arith.constant 0 : i32
    %c0_i32_1 = arith.constant 0 : i32
    return %c0_i32, %c0_i32_0 : i32, i32
  }
  func.func @transform_4(%arg0: i32) -> (i32, i32) {
    %c0_i32 = arith.constant 0 : i32
    %c0_i32_0 = arith.constant 0 : i32
    %c0_i32_1 = arith.constant 0 : i32
    return %c0_i32, %c0_i32_0 : i32, i32
  }
  func.func @transform_5(%arg0: i32) -> (i32, i32) {
    %c0_i32 = arith.constant 0 : i32
    %c0_i32_0 = arith.constant 0 : i32
    %c0_i32_1 = arith.constant 0 : i32
    return %c0_i32, %c0_i32_0 : i32, i32
  }
}

</mosaic_0001>

<llo_original>
// kernel: tpu_custom_call.1
$region0: #{tpu_custom_call.1}
  #allocation0 [shape = 'u32[]', space=smem, size = 0x4, offset = 0x4, fixed_abs, tag = 'smem constant byte address 0x4 - core index']
  #allocation1 [shape = 'u32[144,128]{1,0:T(1,128)}', space=vmem, size = 0x12000, scoped, tag = 'internal scratch']
  #allocation2 [shape = 'f32[2,32]{1,0:T(2,128)}', space=vmem, size = 0x400, scoped, tag = 'scratch operand']
  #allocation3 [shape = 'f32[2,8,96]{2,1,0:T(8,128)}', space=vmem, size = 0x2000, scoped, tag = 'scratch operand']
  %s0 = inlined_call_operand.hbm [shape: f32[2,8,32], index: 0, kind: input, shape index: {}]
  %s1 = inlined_call_operand.hbm [shape: bf16[32,96], index: 1, kind: input, shape index: {}]
  %s2 = inlined_call_operand.hbm [shape: bf16[32,96], index: 2, kind: input, shape index: {}]
  %s3 = inlined_call_operand.vmem [shape: f32[1,96], index: 3, kind: input, shape index: {}]
  %s4 = inlined_call_operand.vmem [shape: f32[1,32], index: 4, kind: input, shape index: {}]
  %s5 = inlined_call_operand.hbm [shape: f32[2,32], index: 5, kind: output, shape index: {}]
  %s6 = sld [smem:[#allocation0]]
  $region50: #{tpu_custom_call.1} parent=0
    _
  %s8 = ssub.s32 1, %s6
  %s9 = scalar_select 0, %s8, %s6
  $region1: #{tpu_custom_call.1} parent=0
    #allocation4 [shape = 'u8[8192]{0}', space=vmem, size = 0x2000, scoped, tag = 'input window, operand 0, single buffered']
    #allocation5 [shape = 's32[1]{0}', space=sflag, size = 0x4, scoped, tag = 'scoped memory for tpu_custom_call.1']
    #allocation6 [shape = 's32[1]{0}', space=sflag, size = 0x4, scoped, tag = 'scoped memory for tpu_custom_call.1']
    #allocation7 [shape = 'u8[8192]{0}', space=vmem, size = 0x2000, scoped, tag = 'input window, operand 1, single buffered']
    #allocation8 [shape = 's32[1]{0}', space=sflag, size = 0x4, scoped, tag = 'scoped memory for tpu_custom_call.1']
    #allocation9 [shape = 'u8[8192]{0}', space=vmem, size = 0x2000, scoped, tag = 'input window, operand 2, single buffered']
    #allocation10 [shape = 'u8[1024]{0}', space=vmem, size = 0x400, scoped, tag = 'output window, operand 0, single buffered']
    %10 = vsyncpa [#allocation5], 0
    %11 = vsyncpa [#allocation8], 0
    %12 = vsyncpa [#allocation6], 0
    // Predicated region
    $region2: #{tpu_custom_call.1} parent=1 // pred_check
      _
    $region3: #{tpu_custom_call.1} parent=1 // pred_check_branch
      %14 = sbr.rel (0) target = $region5
    $region4: #{tpu_custom_call.1} parent=1 // pred_region
      %s16 = ssub.s32 256, 256
      %17 = vsyncadd [#allocation5], %s16
      %s18 = sshll.u32 [#allocation4], 4
      %s19 = int_to_ptr.vmem [resolvable:$true] %s18
      %24 = dma.hbm_to_vmem [thread:$0]  %s0, 256, %s19, [#allocation5], 128, 128, 8
    $region5: #{tpu_custom_call.1} parent=1 // pred_fallthru
      _
    // Predicated region
    $region6: #{tpu_custom_call.1} parent=1 // pred_check
      _
    $region7: #{tpu_custom_call.1} parent=1 // pred_check_branch
      %26 = sbr.rel (0) target = $region9
    $region8: #{tpu_custom_call.1} parent=1 // pred_region
      %s28 = ssub.s32 256, 256
      %29 = vsyncadd [#allocation8], %s28
      %s30 = sshll.u32 [#allocation7], 4
      %s31 = int_to_ptr.vmem [resolvable:$true] %s30
      %36 = dma.hbm_to_vmem [thread:$0]  %s1, 256, %s31, [#allocation8], 64, 64, 4
    $region9: #{tpu_custom_call.1} parent=1 // pred_fallthru
      _
    // Predicated region
    $region10: #{tpu_custom_call.1} parent=1 // pred_check
      _
    $region11: #{tpu_custom_call.1} parent=1 // pred_check_branch
      %38 = sbr.rel (0) target = $region13
    $region12: #{tpu_custom_call.1} parent=1 // pred_region
      %s40 = ssub.s32 256, 256
      %41 = vsyncadd [#allocation8], %s40
      %s42 = sshll.u32 [#allocation9], 4
      %s43 = int_to_ptr.vmem [resolvable:$true] %s42
      %48 = dma.hbm_to_vmem [thread:$0]  %s2, 256, %s43, [#allocation8], 64, 64, 4
    $region13: #{tpu_custom_call.1} parent=1 // pred_fallthru
      _
    // Predicated region
    $region14: #{tpu_custom_call.1} parent=1 // pred_check
      _
    $region15: #{tpu_custom_call.1} parent=1 // pred_check_branch
      %50 = sbr.rel (0) target = $region17
    $region16: #{tpu_custom_call.1} parent=1 // pred_region
      _
    $region17: #{tpu_custom_call.1} parent=1 // pred_fallthru
      _
    // Predicated region
    $region18: #{tpu_custom_call.1} parent=1 // pred_check
      _
    $region19: #{tpu_custom_call.1} parent=1 // pred_check_branch
      %52 = sbr.rel (0) target = $region21
    $region20: #{tpu_custom_call.1} parent=1 // pred_region
      _
    $region21: #{tpu_custom_call.1} parent=1 // pred_fallthru
      _
    // Predicated region
    $region22: #{tpu_custom_call.1} parent=1 // pred_check
      _
    $region23: #{tpu_custom_call.1} parent=1 // pred_check_branch
      %54 = sbr.rel (0) target = $region25
    $region24: #{tpu_custom_call.1} parent=1 // pred_region
      %55 = dma.done [#allocation5], 256
    $region25: #{tpu_custom_call.1} parent=1 // pred_fallthru
      _
    // Predicated region
    $region26: #{tpu_custom_call.1} parent=1 // pred_check
      _
    $region27: #{tpu_custom_call.1} parent=1 // pred_check_branch
      %57 = sbr.rel (0) target = $region29
    $region28: #{tpu_custom_call.1} parent=1 // pred_region
      %58 = dma.done [#allocation8], 256
    $region29: #{tpu_custom_call.1} parent=1 // pred_fallthru
      _
    // Predicated region
    $region30: #{tpu_custom_call.1} parent=1 // pred_check
      _
    $region31: #{tpu_custom_call.1} parent=1 // pred_check_branch
      %60 = sbr.rel (0) target = $region33
    $region32: #{tpu_custom_call.1} parent=1 // pred_region
      %61 = dma.done [#allocation8], 256
    $region33: #{tpu_custom_call.1} parent=1 // pred_fallthru
      _
    %p63 = scmp.eq.s32.totalorder 0, 0
    // Predicated region
    $region34: #{tpu_custom_call.1} parent=1 // pred_check
      %p64 = pneg %p63
    $region35: #{tpu_custom_call.1} parent=1 // pred_check_branch
      %66 = sbr.rel (%p64) target = $region37
    $region36: #{tpu_custom_call.1} parent=1 // pred_region
      %vm67 = vcmask 254976
      %68 = vst.msk [vmem:[#allocation2] sm:$0x3] %vm67, 0.0
    $region37: #{tpu_custom_call.1} parent=1 // pred_fallthru
      _
    %v69 = vld [vmem:[#allocation7] sm:$0xf]
    %v70 = vld [vmem:[#allocation7 + $0x4] sm:$0xf]
    %v71 = vld [vmem:[#allocation7 + $0x8] sm:$0xf]
    %v72 = vld [vmem:[#allocation7 + $0xc] sm:$0xf]
    %v73 = vld [vmem:[#allocation9] sm:$0xf]
    %v74 = vld [vmem:[#allocation9 + $0x4] sm:$0xf]
    %v75 = vld [vmem:[#allocation9 + $0x8] sm:$0xf]
    %v76 = vld [vmem:[#allocation9 + $0xc] sm:$0xf]
    %v77 = vld [vmem:[%s3] sm:$0x1]
    %v78 = vld [vmem:[%s4] sm:$0x1]
    %v79 = vld [vmem:[#allocation4] sm:$0xff]
    %v80 = vpack.c.bf16 %v79, %v79
    %v82 = vlaneseq
    %v83 = vshrl.u32 %v82, 7
    %v84 = vsub.s32 0, %v83
    %v85 = vrot.slane %v77, %v84
    %v91 = vunpack.c.l.b16 %v69
    %v92 = vunpack.c.l.b16 %v70
    %v93 = vunpack.c.l.b16 %v71
    %v94 = vunpack.c.l.b16 %v72
    %v95 = vpack.c.b16 %v92, %v91
    %v96 = vpack.c.b16 %v94, %v93
    %vm99 = vcmask 261120
    %v101 = vsel %vm99, %v80, 0
    %103 = vmatprep.subr.bf16.mxu0 0
    %104 = vmatpush1.bf16.msra.mxu0 0
    %105 = vmatprep.subr.bf16.mxu0 0
    %106 = vmatpush1.bf16.msra.mxu0 0
    %107 = vmatprep.subr.bf16.mxu0 0
    %108 = vmatpush1.bf16.msra.mxu0 0
    %109 = vmatprep.subr.bf16.mxu0 0
    %110 = vmatpush1.bf16.msra.mxu0 0
    %111 = vmatprep.subr.bf16.mxu0 0
    %112 = vmatpush1.bf16.msra.mxu0 0
    %113 = vmatprep.subr.bf16.mxu0 0
    %114 = vmatpush1.bf16.msra.mxu0 0
    %115 = vmatprep.subr.bf16.mxu0 0
    %116 = vmatpush1.bf16.msra.mxu0 %v96
    %117 = vmatprep.subr.bf16.mxu0 0
    %118 = vmatpush1.bf16.msra.mxu0 %v95
    %119 = vmatprep.subr.bf16.mxu0 0
    %120 = vmatpush2.bf16.msra.mxu0 0
    %121 = vmatprep.subr.bf16.mxu0 0
    %122 = vmatpush2.bf16.msra.mxu0 0
    %123 = vmatprep.subr.bf16.mxu0 0
    %124 = vmatpush2.bf16.msra.mxu0 0
    %125 = vmatprep.subr.bf16.mxu0 0
    %126 = vmatpush2.bf16.msra.mxu0 0
    %127 = vmatprep.subr.bf16.mxu0 0
    %128 = vmatpush2.bf16.msra.mxu0 0
    %129 = vmatprep.subr.bf16.mxu0 0
    %130 = vmatpush2.bf16.msra.mxu0 0
    %131 = vmatprep.subr.bf16.mxu0 0
    %132 = vmatpush2.bf16.msra.mxu0 0
    %133 = vmatprep.subr.bf16.mxu0 0
    %134 = vmatpush2.bf16.msra.mxu0 0
    %135 = vmatprep.mubr.bf16.mxu0 0
    %136 = vmatmul.mubr.bf16.gmra.mxu0 %v101
    %v137 = vpop.f32.mrf.mxu0
    %v138 = vadd.f32 %v85, %v137
    %v139 = vpop.f32.mrf.mxu0
    %v140 = vpop.f32.mrf.mxu0
    %v141 = vpop.f32.mrf.mxu0
    %142 = vdwg.mxu0
    %vm143 = vcmask 785408
    %144 = vst.msk [vmem:[#allocation3] sm:$0xff] %vm143, %v138
    %s145 = scalar_lea.vmem [#allocation4], 8
    %v146 = vld [vmem:[%s145] sm:$0xff]
    %v147 = vpack.c.bf16 %v146, %v146
    %v149 = vsel %vm99, %v147, 0
    %151 = vmatprep.subr.bf16.mxu0 0
    %152 = vmatpush1.bf16.msra.mxu0 0
    %153 = vmatprep.subr.bf16.mxu0 0
    %154 = vmatpush1.bf16.msra.mxu0 0
    %155 = vmatprep.subr.bf16.mxu0 0
    %156 = vmatpush1.bf16.msra.mxu0 0
    %157 = vmatprep.subr.bf16.mxu0 0
    %158 = vmatpush1.bf16.msra.mxu0 0
    %159 = vmatprep.subr.bf16.mxu0 0
    %160 = vmatpush1.bf16.msra.mxu0 0
    %161 = vmatprep.subr.bf16.mxu0 0
    %162 = vmatpush1.bf16.msra.mxu0 0
    %163 = vmatprep.subr.bf16.mxu0 0
    %164 = vmatpush1.bf16.msra.mxu0 %v96
    %165 = vmatprep.subr.bf16.mxu0 0
    %166 = vmatpush1.bf16.msra.mxu0 %v95
    %167 = vmatprep.subr.bf16.mxu0 0
    %168 = vmatpush2.bf16.msra.mxu0 0
    %169 = vmatprep.subr.bf16.mxu0 0
    %170 = vmatpush2.bf16.msra.mxu0 0
    %171 = vmatprep.subr.bf16.mxu0 0
    %172 = vmatpush2.bf16.msra.mxu0 0
    %173 = vmatprep.subr.bf16.mxu0 0
    %174 = vmatpush2.bf16.msra.mxu0 0
    %175 = vmatprep.subr.bf16.mxu0 0
    %176 = vmatpush2.bf16.msra.mxu0 0
    %177 = vmatprep.subr.bf16.mxu0 0
    %178 = vmatpush2.bf16.msra.mxu0 0
    %179 = vmatprep.subr.bf16.mxu0 0
    %180 = vmatpush2.bf16.msra.mxu0 0
    %181 = vmatprep.subr.bf16.mxu0 0
    %182 = vmatpush2.bf16.msra.mxu0 0
    %183 = vmatprep.mubr.bf16.mxu0 0
    %184 = vmatmul.mubr.bf16.gmra.mxu0 %v149
    %v185 = vpop.f32.mrf.mxu0
    %v186 = vadd.f32 %v85, %v185
    %v187 = vpop.f32.mrf.mxu0
    %v188 = vpop.f32.mrf.mxu0
    %v189 = vpop.f32.mrf.mxu0
    %190 = vdwg.mxu0
    %s191 = scalar_lea.vmem [#allocation3], 8
    %192 = vst.msk [vmem:[%s191] sm:$0xff] %vm143, %v186
    %v193 = vld [vmem:[#allocation3] sm:$0xff]
    %v194 = vld [vmem:[#allocation3 + $0x8] sm:$0xff]
    %v195 = vld [vmem:[#allocation2] sm:$0x3]
    %v196 = vpack.c.bf16 %v195, %v195
    %v201 = vunpack.c.l.b16 %v73
    %v202 = vunpack.c.l.b16 %v74
    %v203 = vunpack.c.l.b16 %v75
    %v204 = vunpack.c.l.b16 %v76
    %v205 = vpack.c.b16 %v202, %v201
    %v206 = vpack.c.b16 %v204, %v203
    %v210 = vsel %vm99, %v196, 0
    %212 = vmatprep.subr.bf16.mxu0 0
    %213 = vmatpush1.bf16.msra.mxu0 0
    %214 = vmatprep.subr.bf16.mxu0 0
    %215 = vmatpush1.bf16.msra.mxu0 0
    %216 = vmatprep.subr.bf16.mxu0 0
    %217 = vmatpush1.bf16.msra.mxu0 0
    %218 = vmatprep.subr.bf16.mxu0 0
    %219 = vmatpush1.bf16.msra.mxu0 0
    %220 = vmatprep.subr.bf16.mxu0 0
    %221 = vmatpush1.bf16.msra.mxu0 0
    %222 = vmatprep.subr.bf16.mxu0 0
    %223 = vmatpush1.bf16.msra.mxu0 0
    %224 = vmatprep.subr.bf16.mxu0 0
    %225 = vmatpush1.bf16.msra.mxu0 %v206
    %226 = vmatprep.subr.bf16.mxu0 0
    %227 = vmatpush1.bf16.msra.mxu0 %v205
    %228 = vmatprep.subr.bf16.mxu0 0
    %229 = vmatpush2.bf16.msra.mxu0 0
    %230 = vmatprep.subr.bf16.mxu0 0
    %231 = vmatpush2.bf16.msra.mxu0 0
    %232 = vmatprep.subr.bf16.mxu0 0
    %233 = vmatpush2.bf16.msra.mxu0 0
    %234 = vmatprep.subr.bf16.mxu0 0
    %235 = vmatpush2.bf16.msra.mxu0 0
    %236 = vmatprep.subr.bf16.mxu0 0
    %237 = vmatpush2.bf16.msra.mxu0 0
    %238 = vmatprep.subr.bf16.mxu0 0
    %239 = vmatpush2.bf16.msra.mxu0 0
    %240 = vmatprep.subr.bf16.mxu0 0
    %241 = vmatpush2.bf16.msra.mxu0 0
    %242 = vmatprep.subr.bf16.mxu0 0
    %243 = vmatpush2.bf16.msra.mxu0 0
    %244 = vmatprep.mubr.bf16.mxu0 0
    %245 = vmatmul.mubr.bf16.gmra.mxu0 %v210
    %v246 = vpop.f32.mrf.mxu0
    %v247 = vadd.f32 0.0, %v246
    %v248 = vpop.f32.mrf.mxu0
    %v249 = vpop.f32.mrf.mxu0
    %v250 = vpop.f32.mrf.mxu0
    %251 = vdwg.mxu0
    %v253 = vrot.slane %v247, 1
    %v256 = vadd.f32 %v193, %v247
    %v257 = vadd.f32 %v194, %v253
    %v258 = vxor.u32 %v256, 2147483648
    %v259 = vxor.u32 %v257, 2147483648
    %v260 = vmul.f32 %v258, 1.442695
    %v261 = vpow.pop %v260
    %v262 = vmul.f32 %v259, 1.442695
    %v263 = vpow.pop %v262
    %v264 = vadd.f32 %v261, 1.0
    %v265 = vadd.f32 %v263, 1.0
    %v266 = vrcp.pop %v264
    %v267 = vmul.f32 1.0, %v266
    %v268 = vrcp.pop %v265
    %v269 = vmul.f32 1.0, %v268
    %v271 = vlaneseq
    %v272 = vshrl.u32 %v271, 7
    %v273 = vsub.s32 0, %v272
    %v274 = vrot.slane %v78, %v273
    %275 = vrot.lane.b32.xlu0 %v274, 64
    %v276 = vpop.permute.xlu0 %275
    %v278 = vadd.f32 %v247, %v276
    %v280 = vrot.slane %v278, 1
    %281 = vrot.lane.b32.xlu0 %v278, 64
    %v282 = vpop.permute.xlu0 %281
    %283 = vrot.lane.b32.xlu0 %v280, 64
    %v284 = vpop.permute.xlu0 %283
    %v287 = vmul.f32 %v267, %v282
    %v288 = vmul.f32 %v269, %v284
    %291 = vrot.lane.b32.xlu0 %v287, 64
    %v292 = vpop.permute.xlu0 %291
    %293 = vrot.lane.b32.xlu0 %v288, 64
    %v294 = vpop.permute.xlu0 %293
    %v297 = vadd.f32 %v193, %v292
    %v298 = vadd.f32 %v194, %v294
    %v299 = vtanh.pop %v297
    %v300 = vtanh.pop %v298
    %v301 = vsub.f32 1.0, %v267
    %v302 = vsub.f32 1.0, %v269
    %305 = vrot.lane.b32.xlu0 %v299, 96
    %v306 = vpop.permute.xlu0 %305
    %307 = vrot.lane.b32.xlu0 %v300, 96
    %v308 = vpop.permute.xlu0 %307
    %v311 = vmul.f32 %v301, %v306
    %v312 = vmul.f32 %v302, %v308
    %v314 = vrot.slane %v195, 1
    %315 = vrot.lane.b32.xlu0 %v195, 32
    %v316 = vpop.permute.xlu0 %315
    %317 = vrot.lane.b32.xlu0 %v314, 32
    %v318 = vpop.permute.xlu0 %317
    %v321 = vmul.f32 %v267, %v316
    %v322 = vmul.f32 %v269, %v318
    %v323 = vadd.f32 %v311, %v321
    %v324 = vadd.f32 %v312, %v322
    %v325 = vpack.c.bf16 %v323, %v323
    %v326 = vpack.c.bf16 %v324, %v324
    %v329 = vunpack.c.l.b16 %v325
    %v330 = vunpack.c.l.b16 %v326
    %v331 = vrot.slane %v330, 7
    %vm332 = vcmask 1041409
    %v333 = vsel %vm332, %v331, %v329
    %v334 = vpack.c.b16 %v333, %v333
    %335 = vrot.lane.b32.xlu0 %v334, 96
    %v336 = vpop.permute.xlu0 %335
    %v338 = vsel %vm99, %v336, 0
    %340 = vmatprep.subr.bf16.mxu0 0
    %341 = vmatpush1.bf16.msra.mxu0 0
    %342 = vmatprep.subr.bf16.mxu0 0
    %343 = vmatpush1.bf16.msra.mxu0 0
    %344 = vmatprep.subr.bf16.mxu0 0
    %345 = vmatpush1.bf16.msra.mxu0 0
    %346 = vmatprep.subr.bf16.mxu0 0
    %347 = vmatpush1.bf16.msra.mxu0 0
    %348 = vmatprep.subr.bf16.mxu0 0
    %349 = vmatpush1.bf16.msra.mxu0 0
    %350 = vmatprep.subr.bf16.mxu0 0
    %351 = vmatpush1.bf16.msra.mxu0 0
    %352 = vmatprep.subr.bf16.mxu0 0
    %353 = vmatpush1.bf16.msra.mxu0 %v206
    %354 = vmatprep.subr.bf16.mxu0 0
    %355 = vmatpush1.bf16.msra.mxu0 %v205
    %356 = vmatprep.subr.bf16.mxu0 0
    %357 = vmatpush2.bf16.msra.mxu0 0
    %358 = vmatprep.subr.bf16.mxu0 0
    %359 = vmatpush2.bf16.msra.mxu0 0
    %360 = vmatprep.subr.bf16.mxu0 0
    %361 = vmatpush2.bf16.msra.mxu0 0
    %362 = vmatprep.subr.bf16.mxu0 0
    %363 = vmatpush2.bf16.msra.mxu0 0
    %364 = vmatprep.subr.bf16.mxu0 0
    %365 = vmatpush2.bf16.msra.mxu0 0
    %366 = vmatprep.subr.bf16.mxu0 0
    %367 = vmatpush2.bf16.msra.mxu0 0
    %368 = vmatprep.subr.bf16.mxu0 0
    %369 = vmatpush2.bf16.msra.mxu0 0
    %370 = vmatprep.subr.bf16.mxu0 0
    %371 = vmatpush2.bf16.msra.mxu0 0
    %372 = vmatprep.mubr.bf16.mxu0 0
    %373 = vmatmul.mubr.bf16.gmra.mxu0 %v338
    %v374 = vpop.f32.mrf.mxu0
    %v375 = vadd.f32 0.0, %v374
    %v376 = vpop.f32.mrf.mxu0
    %v377 = vpop.f32.mrf.mxu0
    %v378 = vpop.f32.mrf.mxu0
    %379 = vdwg.mxu0
    %v381 = vrot.slane %v375, 7
    %v384 = vadd.f32 %v193, %v381
    %v385 = vadd.f32 %v194, %v375
    %v386 = vxor.u32 %v384, 2147483648
    %v387 = vxor.u32 %v385, 2147483648
    %v388 = vmul.f32 %v386, 1.442695
    %v389 = vpow.pop %v388
    %v390 = vmul.f32 %v387, 1.442695
    %v391 = vpow.pop %v390
    %v392 = vadd.f32 %v389, 1.0
    %v393 = vadd.f32 %v391, 1.0
    %v394 = vrcp.pop %v392
    %v395 = vmul.f32 1.0, %v394
    %v396 = vrcp.pop %v393
    %v397 = vmul.f32 1.0, %v396
    %v398 = vadd.f32 %v375, %v276
    %v400 = vrot.slane %v398, 7
    %401 = vrot.lane.b32.xlu0 %v400, 64
    %v402 = vpop.permute.xlu0 %401
    %403 = vrot.lane.b32.xlu0 %v398, 64
    %v404 = vpop.permute.xlu0 %403
    %v407 = vmul.f32 %v395, %v402
    %v408 = vmul.f32 %v397, %v404
    %411 = vrot.lane.b32.xlu0 %v407, 64
    %v412 = vpop.permute.xlu0 %411
    %413 = vrot.lane.b32.xlu0 %v408, 64
    %v414 = vpop.permute.xlu0 %413
    %v417 = vadd.f32 %v193, %v412
    %v418 = vadd.f32 %v194, %v414
    %v419 = vtanh.pop %v417
    %v420 = vtanh.pop %v418
    %v421 = vsub.f32 1.0, %v395
    %v422 = vsub.f32 1.0, %v397
    %425 = vrot.lane.b32.xlu0 %v419, 96
    %v426 = vpop.permute.xlu0 %425
    %427 = vrot.lane.b32.xlu0 %v420, 96
    %v428 = vpop.permute.xlu0 %427
    %v431 = vmul.f32 %v421, %v426
    %v432 = vmul.f32 %v422, %v428
    %v435 = vrot.slane %v323, 7
    %v436 = vrot.slane %v324, 7
    %v439 = vmul.f32 %v395, %v435
    %v440 = vmul.f32 %v397, %v436
    %v441 = vadd.f32 %v431, %v439
    %v442 = vadd.f32 %v432, %v440
    %v443 = vpack.c.bf16 %v441, %v441
    %v444 = vpack.c.bf16 %v442, %v442
    %v447 = vunpack.c.l.b16 %v443
    %v448 = vunpack.c.l.b16 %v444
    %v449 = vrot.slane %v447, 1
    %v450 = vsel %vm332, %v448, %v449
    %v451 = vpack.c.b16 %v450, %v450
    %452 = vrot.lane.b32.xlu0 %v451, 96
    %v453 = vpop.permute.xlu0 %452
    %v455 = vsel %vm99, %v453, 0
    %457 = vmatprep.subr.bf16.mxu0 0
    %458 = vmatpush1.bf16.msra.mxu0 0
    %459 = vmatprep.subr.bf16.mxu0 0
    %460 = vmatpush1.bf16.msra.mxu0 0
    %461 = vmatprep.subr.bf16.mxu0 0
    %462 = vmatpush1.bf16.msra.mxu0 0
    %463 = vmatprep.subr.bf16.mxu0 0
    %464 = vmatpush1.bf16.msra.mxu0 0
    %465 = vmatprep.subr.bf16.mxu0 0
    %466 = vmatpush1.bf16.msra.mxu0 0
    %467 = vmatprep.subr.bf16.mxu0 0
    %468 = vmatpush1.bf16.msra.mxu0 0
    %469 = vmatprep.subr.bf16.mxu0 0
    %470 = vmatpush1.bf16.msra.mxu0 %v206
    %471 = vmatprep.subr.bf16.mxu0 0
    %472 = vmatpush1.bf16.msra.mxu0 %v205
    %473 = vmatprep.subr.bf16.mxu0 0
    %474 = vmatpush2.bf16.msra.mxu0 0
    %475 = vmatprep.subr.bf16.mxu0 0
    %476 = vmatpush2.bf16.msra.mxu0 0
    %477 = vmatprep.subr.bf16.mxu0 0
    %478 = vmatpush2.bf16.msra.mxu0 0
    %479 = vmatprep.subr.bf16.mxu0 0
    %480 = vmatpush2.bf16.msra.mxu0 0
    %481 = vmatprep.subr.bf16.mxu0 0
    %482 = vmatpush2.bf16.msra.mxu0 0
    %483 = vmatprep.subr.bf16.mxu0 0
    %484 = vmatpush2.bf16.msra.mxu0 0
    %485 = vmatprep.subr.bf16.mxu0 0
    %486 = vmatpush2.bf16.msra.mxu0 0
    %487 = vmatprep.subr.bf16.mxu0 0
    %488 = vmatpush2.bf16.msra.mxu0 0
    %489 = vmatprep.mubr.bf16.mxu0 0
    %490 = vmatmul.mubr.bf16.gmra.mxu0 %v455
    %v491 = vpop.f32.mrf.mxu0
    %v492 = vadd.f32 0.0, %v491
    %v493 = vpop.f32.mrf.mxu0
    %v494 = vpop.f32.mrf.mxu0
    %v495 = vpop.f32.mrf.mxu0
    %496 = vdwg.mxu0
    %v498 = vrot.slane %v492, 6
    %v499 = vrot.slane %v492, 7
    %v502 = vadd.f32 %v193, %v498
    %v503 = vadd.f32 %v194, %v499
    %v504 = vxor.u32 %v502, 2147483648
    %v505 = vxor.u32 %v503, 2147483648
    %v506 = vmul.f32 %v504, 1.442695
    %v507 = vpow.pop %v506
    %v508 = vmul.f32 %v505, 1.442695
    %v509 = vpow.pop %v508
    %v510 = vadd.f32 %v507, 1.0
    %v511 = vadd.f32 %v509, 1.0
    %v512 = vrcp.pop %v510
    %v513 = vmul.f32 1.0, %v512
    %v514 = vrcp.pop %v511
    %v515 = vmul.f32 1.0, %v514
    %v516 = vadd.f32 %v492, %v276
    %v518 = vrot.slane %v516, 6
    %v519 = vrot.slane %v516, 7
    %520 = vrot.lane.b32.xlu0 %v518, 64
    %v521 = vpop.permute.xlu0 %520
    %522 = vrot.lane.b32.xlu0 %v519, 64
    %v523 = vpop.permute.xlu0 %522
    %v526 = vmul.f32 %v513, %v521
    %v527 = vmul.f32 %v515, %v523
    %530 = vrot.lane.b32.xlu0 %v526, 64
    %v531 = vpop.permute.xlu0 %530
    %532 = vrot.lane.b32.xlu0 %v527, 64
    %v533 = vpop.permute.xlu0 %532
    %v536 = vadd.f32 %v193, %v531
    %v537 = vadd.f32 %v194, %v533
    %v538 = vtanh.pop %v536
    %v539 = vtanh.pop %v537
    %v540 = vsub.f32 1.0, %v513
    %v541 = vsub.f32 1.0, %v515
    %544 = vrot.lane.b32.xlu0 %v538, 96
    %v545 = vpop.permute.xlu0 %544
    %546 = vrot.lane.b32.xlu0 %v539, 96
    %v547 = vpop.permute.xlu0 %546
    %v550 = vmul.f32 %v540, %v545
    %v551 = vmul.f32 %v541, %v547
    %v554 = vrot.slane %v441, 7
    %v555 = vrot.slane %v442, 7
    %v558 = vmul.f32 %v513, %v554
    %v559 = vmul.f32 %v515, %v555
    %v560 = vadd.f32 %v550, %v558
    %v561 = vadd.f32 %v551, %v559
    %v562 = vpack.c.bf16 %v560, %v560
    %v563 = vpack.c.bf16 %v561, %v561
    %v566 = vunpack.c.l.b16 %v562
    %v567 = vunpack.c.l.b16 %v563
    %v568 = vrot.slane %v566, 2
    %v569 = vrot.slane %v567, 1
    %v570 = vsel %vm332, %v569, %v568
    %v571 = vpack.c.b16 %v570, %v570
    %572 = vrot.lane.b32.xlu0 %v571, 96
    %v573 = vpop.permute.xlu0 %572
    %v575 = vsel %vm99, %v573, 0
    %577 = vmatprep.subr.bf16.mxu0 0
    %578 = vmatpush1.bf16.msra.mxu0 0
    %579 = vmatprep.subr.bf16.mxu0 0
    %580 = vmatpush1.bf16.msra.mxu0 0
    %581 = vmatprep.subr.bf16.mxu0 0
    %582 = vmatpush1.bf16.msra.mxu0 0
    %583 = vmatprep.subr.bf16.mxu0 0
    %584 = vmatpush1.bf16.msra.mxu0 0
    %585 = vmatprep.subr.bf16.mxu0 0
    %586 = vmatpush1.bf16.msra.mxu0 0
    %587 = vmatprep.subr.bf16.mxu0 0
    %588 = vmatpush1.bf16.msra.mxu0 0
    %589 = vmatprep.subr.bf16.mxu0 0
    %590 = vmatpush1.bf16.msra.mxu0 %v206
    %591 = vmatprep.subr.bf16.mxu0 0
    %592 = vmatpush1.bf16.msra.mxu0 %v205
    %593 = vmatprep.subr.bf16.mxu0 0
    %594 = vmatpush2.bf16.msra.mxu0 0
    %595 = vmatprep.subr.bf16.mxu0 0
    %596 = vmatpush2.bf16.msra.mxu0 0
    %597 = vmatprep.subr.bf16.mxu0 0
    %598 = vmatpush2.bf16.msra.mxu0 0
    %599 = vmatprep.subr.bf16.mxu0 0
    %600 = vmatpush2.bf16.msra.mxu0 0
    %601 = vmatprep.subr.bf16.mxu0 0
    %602 = vmatpush2.bf16.msra.mxu0 0
    %603 = vmatprep.subr.bf16.mxu0 0
    %604 = vmatpush2.bf16.msra.mxu0 0
    %605 = vmatprep.subr.bf16.mxu0 0
    %606 = vmatpush2.bf16.msra.mxu0 0
    %607 = vmatprep.subr.bf16.mxu0 0
    %608 = vmatpush2.bf16.msra.mxu0 0
    %609 = vmatprep.mubr.bf16.mxu0 0
    %610 = vmatmul.mubr.bf16.gmra.mxu0 %v575
    %v611 = vpop.f32.mrf.mxu0
    %v612 = vadd.f32 0.0, %v611
    %v613 = vpop.f32.mrf.mxu0
    %v614 = vpop.f32.mrf.mxu0
    %v615 = vpop.f32.mrf.mxu0
    %616 = vdwg.mxu0
    %v618 = vrot.slane %v612, 5
    %v619 = vrot.slane %v612, 6
    %v622 = vadd.f32 %v193, %v618
    %v623 = vadd.f32 %v194, %v619
    %v624 = vxor.u32 %v622, 2147483648
    %v625 = vxor.u32 %v623, 2147483648
    %v626 = vmul.f32 %v624, 1.442695
    %v627 = vpow.pop %v626
    %v628 = vmul.f32 %v625, 1.442695
    %v629 = vpow.pop %v628
    %v630 = vadd.f32 %v627, 1.0
    %v631 = vadd.f32 %v629, 1.0
    %v632 = vrcp.pop %v630
    %v633 = vmul.f32 1.0, %v632
    %v634 = vrcp.pop %v631
    %v635 = vmul.f32 1.0, %v634
    %v636 = vadd.f32 %v612, %v276
    %v638 = vrot.slane %v636, 5
    %v639 = vrot.slane %v636, 6
    %640 = vrot.lane.b32.xlu0 %v638, 64
    %v641 = vpop.permute.xlu0 %640
    %642 = vrot.lane.b32.xlu0 %v639, 64
    %v643 = vpop.permute.xlu0 %642
    %v646 = vmul.f32 %v633, %v641
    %v647 = vmul.f32 %v635, %v643
    %650 = vrot.lane.b32.xlu0 %v646, 64
    %v651 = vpop.permute.xlu0 %650
    %652 = vrot.lane.b32.xlu0 %v647, 64
    %v653 = vpop.permute.xlu0 %652
    %v656 = vadd.f32 %v193, %v651
    %v657 = vadd.f32 %v194, %v653
    %v658 = vtanh.pop %v656
    %v659 = vtanh.pop %v657
    %v660 = vsub.f32 1.0, %v633
    %v661 = vsub.f32 1.0, %v635
    %664 = vrot.lane.b32.xlu0 %v658, 96
    %v665 = vpop.permute.xlu0 %664
    %666 = vrot.lane.b32.xlu0 %v659, 96
    %v667 = vpop.permute.xlu0 %666
    %v670 = vmul.f32 %v660, %v665
    %v671 = vmul.f32 %v661, %v667
    %v674 = vrot.slane %v560, 7
    %v675 = vrot.slane %v561, 7
    %v678 = vmul.f32 %v633, %v674
    %v679 = vmul.f32 %v635, %v675
    %v680 = vadd.f32 %v670, %v678
    %v681 = vadd.f32 %v671, %v679
    %v682 = vpack.c.bf16 %v680, %v680
    %v683 = vpack.c.bf16 %v681, %v681
    %v686 = vunpack.c.l.b16 %v682
    %v687 = vunpack.c.l.b16 %v683
    %v688 = vrot.slane %v686, 3
    %v689 = vrot.slane %v687, 2
    %v690 = vsel %vm332, %v689, %v688
    %v691 = vpack.c.b16 %v690, %v690
    %692 = vrot.lane.b32.xlu0 %v691, 96
    %v693 = vpop.permute.xlu0 %692
    %v695 = vsel %vm99, %v693, 0
    %697 = vmatprep.subr.bf16.mxu0 0
    %698 = vmatpush1.bf16.msra.mxu0 0
    %699 = vmatprep.subr.bf16.mxu0 0
    %700 = vmatpush1.bf16.msra.mxu0 0
    %701 = vmatprep.subr.bf16.mxu0 0
    %702 = vmatpush1.bf16.msra.mxu0 0
    %703 = vmatprep.subr.bf16.mxu0 0
    %704 = vmatpush1.bf16.msra.mxu0 0
    %705 = vmatprep.subr.bf16.mxu0 0
    %706 = vmatpush1.bf16.msra.mxu0 0
    %707 = vmatprep.subr.bf16.mxu0 0
    %708 = vmatpush1.bf16.msra.mxu0 0
    %709 = vmatprep.subr.bf16.mxu0 0
    %710 = vmatpush1.bf16.msra.mxu0 %v206
    %711 = vmatprep.subr.bf16.mxu0 0
    %712 = vmatpush1.bf16.msra.mxu0 %v205
    %713 = vmatprep.subr.bf16.mxu0 0
    %714 = vmatpush2.bf16.msra.mxu0 0
    %715 = vmatprep.subr.bf16.mxu0 0
    %716 = vmatpush2.bf16.msra.mxu0 0
    %717 = vmatprep.subr.bf16.mxu0 0
    %718 = vmatpush2.bf16.msra.mxu0 0
    %719 = vmatprep.subr.bf16.mxu0 0
    %720 = vmatpush2.bf16.msra.mxu0 0
    %721 = vmatprep.subr.bf16.mxu0 0
    %722 = vmatpush2.bf16.msra.mxu0 0
    %723 = vmatprep.subr.bf16.mxu0 0
    %724 = vmatpush2.bf16.msra.mxu0 0
    %725 = vmatprep.subr.bf16.mxu0 0
    %726 = vmatpush2.bf16.msra.mxu0 0
    %727 = vmatprep.subr.bf16.mxu0 0
    %728 = vmatpush2.bf16.msra.mxu0 0
    %729 = vmatprep.mubr.bf16.mxu0 0
    %730 = vmatmul.mubr.bf16.gmra.mxu0 %v695
    %v731 = vpop.f32.mrf.mxu0
    %v732 = vadd.f32 0.0, %v731
    %v733 = vpop.f32.mrf.mxu0
    %v734 = vpop.f32.mrf.mxu0
    %v735 = vpop.f32.mrf.mxu0
    %736 = vdwg.mxu0
    %v738 = vrot.slane %v732, 4
    %v739 = vrot.slane %v732, 5
    %v742 = vadd.f32 %v193, %v738
    %v743 = vadd.f32 %v194, %v739
    %v744 = vxor.u32 %v742, 2147483648
    %v745 = vxor.u32 %v743, 2147483648
    %v746 = vmul.f32 %v744, 1.442695
    %v747 = vpow.pop %v746
    %v748 = vmul.f32 %v745, 1.442695
    %v749 = vpow.pop %v748
    %v750 = vadd.f32 %v747, 1.0
    %v751 = vadd.f32 %v749, 1.0
    %v752 = vrcp.pop %v750
    %v753 = vmul.f32 1.0, %v752
    %v754 = vrcp.pop %v751
    %v755 = vmul.f32 1.0, %v754
    %v756 = vadd.f32 %v732, %v276
    %v758 = vrot.slane %v756, 4
    %v759 = vrot.slane %v756, 5
    %760 = vrot.lane.b32.xlu0 %v758, 64
    %v761 = vpop.permute.xlu0 %760
    %762 = vrot.lane.b32.xlu0 %v759, 64
    %v763 = vpop.permute.xlu0 %762
    %v766 = vmul.f32 %v753, %v761
    %v767 = vmul.f32 %v755, %v763
    %770 = vrot.lane.b32.xlu0 %v766, 64
    %v771 = vpop.permute.xlu0 %770
    %772 = vrot.lane.b32.xlu0 %v767, 64
    %v773 = vpop.permute.xlu0 %772
    %v776 = vadd.f32 %v193, %v771
    %v777 = vadd.f32 %v194, %v773
    %v778 = vtanh.pop %v776
    %v779 = vtanh.pop %v777
    %v780 = vsub.f32 1.0, %v753
    %v781 = vsub.f32 1.0, %v755
    %784 = vrot.lane.b32.xlu0 %v778, 96
    %v785 = vpop.permute.xlu0 %784
    %786 = vrot.lane.b32.xlu0 %v779, 96
    %v787 = vpop.permute.xlu0 %786
    %v790 = vmul.f32 %v780, %v785
    %v791 = vmul.f32 %v781, %v787
    %v794 = vrot.slane %v680, 7
    %v795 = vrot.slane %v681, 7
    %v798 = vmul.f32 %v753, %v794
    %v799 = vmul.f32 %v755, %v795
    %v800 = vadd.f32 %v790, %v798
    %v801 = vadd.f32 %v791, %v799
    %v802 = vpack.c.bf16 %v800, %v800
    %v803 = vpack.c.bf16 %v801, %v801
    %v806 = vunpack.c.l.b16 %v802
    %v807 = vunpack.c.l.b16 %v803
    %v808 = vrot.slane %v806, 4
    %v809 = vrot.slane %v807, 3
    %v810 = vsel %vm332, %v809, %v808
    %v811 = vpack.c.b16 %v810, %v810
    %812 = vrot.lane.b32.xlu0 %v811, 96
    %v813 = vpop.permute.xlu0 %812
    %v815 = vsel %vm99, %v813, 0
    %817 = vmatprep.subr.bf16.mxu0 0
    %818 = vmatpush1.bf16.msra.mxu0 0
    %819 = vmatprep.subr.bf16.mxu0 0
    %820 = vmatpush1.bf16.msra.mxu0 0
    %821 = vmatprep.subr.bf16.mxu0 0
    %822 = vmatpush1.bf16.msra.mxu0 0
    %823 = vmatprep.subr.bf16.mxu0 0
    %824 = vmatpush1.bf16.msra.mxu0 0
    %825 = vmatprep.subr.bf16.mxu0 0
    %826 = vmatpush1.bf16.msra.mxu0 0
    %827 = vmatprep.subr.bf16.mxu0 0
    %828 = vmatpush1.bf16.msra.mxu0 0
    %829 = vmatprep.subr.bf16.mxu0 0
    %830 = vmatpush1.bf16.msra.mxu0 %v206
    %831 = vmatprep.subr.bf16.mxu0 0
    %832 = vmatpush1.bf16.msra.mxu0 %v205
    %833 = vmatprep.subr.bf16.mxu0 0
    %834 = vmatpush2.bf16.msra.mxu0 0
    %835 = vmatprep.subr.bf16.mxu0 0
    %836 = vmatpush2.bf16.msra.mxu0 0
    %837 = vmatprep.subr.bf16.mxu0 0
    %838 = vmatpush2.bf16.msra.mxu0 0
    %839 = vmatprep.subr.bf16.mxu0 0
    %840 = vmatpush2.bf16.msra.mxu0 0
    %841 = vmatprep.subr.bf16.mxu0 0
    %842 = vmatpush2.bf16.msra.mxu0 0
    %843 = vmatprep.subr.bf16.mxu0 0
    %844 = vmatpush2.bf16.msra.mxu0 0
    %845 = vmatprep.subr.bf16.mxu0 0
    %846 = vmatpush2.bf16.msra.mxu0 0
    %847 = vmatprep.subr.bf16.mxu0 0
    %848 = vmatpush2.bf16.msra.mxu0 0
    %849 = vmatprep.mubr.bf16.mxu0 0
    %850 = vmatmul.mubr.bf16.gmra.mxu0 %v815
    %v851 = vpop.f32.mrf.mxu0
    %v852 = vadd.f32 0.0, %v851
    %v853 = vpop.f32.mrf.mxu0
    %v854 = vpop.f32.mrf.mxu0
    %v855 = vpop.f32.mrf.mxu0
    %856 = vdwg.mxu0
    %v858 = vrot.slane %v852, 3
    %v859 = vrot.slane %v852, 4
    %v862 = vadd.f32 %v193, %v858
    %v863 = vadd.f32 %v194, %v859
    %v864 = vxor.u32 %v862, 2147483648
    %v865 = vxor.u32 %v863, 2147483648
    %v866 = vmul.f32 %v864, 1.442695
    %v867 = vpow.pop %v866
    %v868 = vmul.f32 %v865, 1.442695
    %v869 = vpow.pop %v868
    %v870 = vadd.f32 %v867, 1.0
    %v871 = vadd.f32 %v869, 1.0
    %v872 = vrcp.pop %v870
    %v873 = vmul.f32 1.0, %v872
    %v874 = vrcp.pop %v871
    %v875 = vmul.f32 1.0, %v874
    %v876 = vadd.f32 %v852, %v276
    %v878 = vrot.slane %v876, 3
    %v879 = vrot.slane %v876, 4
    %880 = vrot.lane.b32.xlu0 %v878, 64
    %v881 = vpop.permute.xlu0 %880
    %882 = vrot.lane.b32.xlu0 %v879, 64
    %v883 = vpop.permute.xlu0 %882
    %v886 = vmul.f32 %v873, %v881
    %v887 = vmul.f32 %v875, %v883
    %890 = vrot.lane.b32.xlu0 %v886, 64
    %v891 = vpop.permute.xlu0 %890
    %892 = vrot.lane.b32.xlu0 %v887, 64
    %v893 = vpop.permute.xlu0 %892
    %v896 = vadd.f32 %v193, %v891
    %v897 = vadd.f32 %v194, %v893
    %v898 = vtanh.pop %v896
    %v899 = vtanh.pop %v897
    %v900 = vsub.f32 1.0, %v873
    %v901 = vsub.f32 1.0, %v875
    %904 = vrot.lane.b32.xlu0 %v898, 96
    %v905 = vpop.permute.xlu0 %904
    %906 = vrot.lane.b32.xlu0 %v899, 96
    %v907 = vpop.permute.xlu0 %906
    %v910 = vmul.f32 %v900, %v905
    %v911 = vmul.f32 %v901, %v907
    %v914 = vrot.slane %v800, 7
    %v915 = vrot.slane %v801, 7
    %v918 = vmul.f32 %v873, %v914
    %v919 = vmul.f32 %v875, %v915
    %v920 = vadd.f32 %v910, %v918
    %v921 = vadd.f32 %v911, %v919
    %v922 = vpack.c.bf16 %v920, %v920
    %v923 = vpack.c.bf16 %v921, %v921
    %v926 = vunpack.c.l.b16 %v922
    %v927 = vunpack.c.l.b16 %v923
    %v928 = vrot.slane %v926, 5
    %v929 = vrot.slane %v927, 4
    %v930 = vsel %vm332, %v929, %v928
    %v931 = vpack.c.b16 %v930, %v930
    %932 = vrot.lane.b32.xlu0 %v931, 96
    %v933 = vpop.permute.xlu0 %932
    %v935 = vsel %vm99, %v933, 0
    %937 = vmatprep.subr.bf16.mxu0 0
    %938 = vmatpush1.bf16.msra.mxu0 0
    %939 = vmatprep.subr.bf16.mxu0 0
    %940 = vmatpush1.bf16.msra.mxu0 0
    %941 = vmatprep.subr.bf16.mxu0 0
    %942 = vmatpush1.bf16.msra.mxu0 0
    %943 = vmatprep.subr.bf16.mxu0 0
    %944 = vmatpush1.bf16.msra.mxu0 0
    %945 = vmatprep.subr.bf16.mxu0 0
    %946 = vmatpush1.bf16.msra.mxu0 0
    %947 = vmatprep.subr.bf16.mxu0 0
    %948 = vmatpush1.bf16.msra.mxu0 0
    %949 = vmatprep.subr.bf16.mxu0 0
    %950 = vmatpush1.bf16.msra.mxu0 %v206
    %951 = vmatprep.subr.bf16.mxu0 0
    %952 = vmatpush1.bf16.msra.mxu0 %v205
    %953 = vmatprep.subr.bf16.mxu0 0
    %954 = vmatpush2.bf16.msra.mxu0 0
    %955 = vmatprep.subr.bf16.mxu0 0
    %956 = vmatpush2.bf16.msra.mxu0 0
    %957 = vmatprep.subr.bf16.mxu0 0
    %958 = vmatpush2.bf16.msra.mxu0 0
    %959 = vmatprep.subr.bf16.mxu0 0
    %960 = vmatpush2.bf16.msra.mxu0 0
    %961 = vmatprep.subr.bf16.mxu0 0
    %962 = vmatpush2.bf16.msra.mxu0 0
    %963 = vmatprep.subr.bf16.mxu0 0
    %964 = vmatpush2.bf16.msra.mxu0 0
    %965 = vmatprep.subr.bf16.mxu0 0
    %966 = vmatpush2.bf16.msra.mxu0 0
    %967 = vmatprep.subr.bf16.mxu0 0
    %968 = vmatpush2.bf16.msra.mxu0 0
    %969 = vmatprep.mubr.bf16.mxu0 0
    %970 = vmatmul.mubr.bf16.gmra.mxu0 %v935
    %v971 = vpop.f32.mrf.mxu0
    %v972 = vadd.f32 0.0, %v971
    %v973 = vpop.f32.mrf.mxu0
    %v974 = vpop.f32.mrf.mxu0
    %v975 = vpop.f32.mrf.mxu0
    %976 = vdwg.mxu0
    %v978 = vrot.slane %v972, 2
    %v979 = vrot.slane %v972, 3
    %v982 = vadd.f32 %v193, %v978
    %v983 = vadd.f32 %v194, %v979
    %v984 = vxor.u32 %v982, 2147483648
    %v985 = vxor.u32 %v983, 2147483648
    %v986 = vmul.f32 %v984, 1.442695
    %v987 = vpow.pop %v986
    %v988 = vmul.f32 %v985, 1.442695
    %v989 = vpow.pop %v988
    %v990 = vadd.f32 %v987, 1.0
    %v991 = vadd.f32 %v989, 1.0
    %v992 = vrcp.pop %v990
    %v993 = vmul.f32 1.0, %v992
    %v994 = vrcp.pop %v991
    %v995 = vmul.f32 1.0, %v994
    %v996 = vadd.f32 %v972, %v276
    %v998 = vrot.slane %v996, 2
    %v999 = vrot.slane %v996, 3
    %1000 = vrot.lane.b32.xlu0 %v998, 64
    %v1001 = vpop.permute.xlu0 %1000
    %1002 = vrot.lane.b32.xlu0 %v999, 64
    %v1003 = vpop.permute.xlu0 %1002
    %v1006 = vmul.f32 %v993, %v1001
    %v1007 = vmul.f32 %v995, %v1003
    %1010 = vrot.lane.b32.xlu0 %v1006, 64
    %v1011 = vpop.permute.xlu0 %1010
    %1012 = vrot.lane.b32.xlu0 %v1007, 64
    %v1013 = vpop.permute.xlu0 %1012
    %v1016 = vadd.f32 %v193, %v1011
    %v1017 = vadd.f32 %v194, %v1013
    %v1018 = vtanh.pop %v1016
    %v1019 = vtanh.pop %v1017
    %v1020 = vsub.f32 1.0, %v993
    %v1021 = vsub.f32 1.0, %v995
    %1024 = vrot.lane.b32.xlu0 %v1018, 96
    %v1025 = vpop.permute.xlu0 %1024
    %1026 = vrot.lane.b32.xlu0 %v1019, 96
    %v1027 = vpop.permute.xlu0 %1026
    %v1030 = vmul.f32 %v1020, %v1025
    %v1031 = vmul.f32 %v1021, %v1027
    %v1034 = vrot.slane %v920, 7
    %v1035 = vrot.slane %v921, 7
    %v1038 = vmul.f32 %v993, %v1034
    %v1039 = vmul.f32 %v995, %v1035
    %v1040 = vadd.f32 %v1030, %v1038
    %v1041 = vadd.f32 %v1031, %v1039
    %v1042 = vpack.c.bf16 %v1040, %v1040
    %v1043 = vpack.c.bf16 %v1041, %v1041
    %v1046 = vunpack.c.l.b16 %v1042
    %v1047 = vunpack.c.l.b16 %v1043
    %v1048 = vrot.slane %v1046, 6
    %v1049 = vrot.slane %v1047, 5
    %v1050 = vsel %vm332, %v1049, %v1048
    %v1051 = vpack.c.b16 %v1050, %v1050
    %1052 = vrot.lane.b32.xlu0 %v1051, 96
    %v1053 = vpop.permute.xlu0 %1052
    %v1055 = vsel %vm99, %v1053, 0
    %1057 = vmatprep.subr.bf16.mxu0 0
    %1058 = vmatpush1.bf16.msra.mxu0 0
    %1059 = vmatprep.subr.bf16.mxu0 0
    %1060 = vmatpush1.bf16.msra.mxu0 0
    %1061 = vmatprep.subr.bf16.mxu0 0
    %1062 = vmatpush1.bf16.msra.mxu0 0
    %1063 = vmatprep.subr.bf16.mxu0 0
    %1064 = vmatpush1.bf16.msra.mxu0 0
    %1065 = vmatprep.subr.bf16.mxu0 0
    %1066 = vmatpush1.bf16.msra.mxu0 0
    %1067 = vmatprep.subr.bf16.mxu0 0
    %1068 = vmatpush1.bf16.msra.mxu0 0
    %1069 = vmatprep.subr.bf16.mxu0 0
    %1070 = vmatpush1.bf16.msra.mxu0 %v206
    %1071 = vmatprep.subr.bf16.mxu0 0
    %1072 = vmatpush1.bf16.msra.mxu0 %v205
    %1073 = vmatprep.subr.bf16.mxu0 0
    %1074 = vmatpush2.bf16.msra.mxu0 0
    %1075 = vmatprep.subr.bf16.mxu0 0
    %1076 = vmatpush2.bf16.msra.mxu0 0
    %1077 = vmatprep.subr.bf16.mxu0 0
    %1078 = vmatpush2.bf16.msra.mxu0 0
    %1079 = vmatprep.subr.bf16.mxu0 0
    %1080 = vmatpush2.bf16.msra.mxu0 0
    %1081 = vmatprep.subr.bf16.mxu0 0
    %1082 = vmatpush2.bf16.msra.mxu0 0
    %1083 = vmatprep.subr.bf16.mxu0 0
    %1084 = vmatpush2.bf16.msra.mxu0 0
    %1085 = vmatprep.subr.bf16.mxu0 0
    %1086 = vmatpush2.bf16.msra.mxu0 0
    %1087 = vmatprep.subr.bf16.mxu0 0
    %1088 = vmatpush2.bf16.msra.mxu0 0
    %1089 = vmatprep.mubr.bf16.mxu0 0
    %1090 = vmatmul.mubr.bf16.gmra.mxu0 %v1055
    %v1091 = vpop.f32.mrf.mxu0
    %v1092 = vadd.f32 0.0, %v1091
    %v1093 = vpop.f32.mrf.mxu0
    %v1094 = vpop.f32.mrf.mxu0
    %v1095 = vpop.f32.mrf.mxu0
    %1096 = vdwg.mxu0
    %v1098 = vrot.slane %v1092, 1
    %v1099 = vrot.slane %v1092, 2
    %v1102 = vadd.f32 %v193, %v1098
    %v1103 = vadd.f32 %v194, %v1099
    %v1104 = vxor.u32 %v1102, 2147483648
    %v1105 = vxor.u32 %v1103, 2147483648
    %v1106 = vmul.f32 %v1104, 1.442695
    %v1107 = vpow.pop %v1106
    %v1108 = vmul.f32 %v1105, 1.442695
    %v1109 = vpow.pop %v1108
    %v1110 = vadd.f32 %v1107, 1.0
    %v1111 = vadd.f32 %v1109, 1.0
    %v1112 = vrcp.pop %v1110
    %v1113 = vmul.f32 1.0, %v1112
    %v1114 = vrcp.pop %v1111
    %v1115 = vmul.f32 1.0, %v1114
    %v1116 = vadd.f32 %v1092, %v276
    %v1118 = vrot.slane %v1116, 1
    %v1119 = vrot.slane %v1116, 2
    %1120 = vrot.lane.b32.xlu0 %v1118, 64
    %v1121 = vpop.permute.xlu0 %1120
    %1122 = vrot.lane.b32.xlu0 %v1119, 64
    %v1123 = vpop.permute.xlu0 %1122
    %v1126 = vmul.f32 %v1113, %v1121
    %v1127 = vmul.f32 %v1115, %v1123
    %1130 = vrot.lane.b32.xlu0 %v1126, 64
    %v1131 = vpop.permute.xlu0 %1130
    %1132 = vrot.lane.b32.xlu0 %v1127, 64
    %v1133 = vpop.permute.xlu0 %1132
    %v1136 = vadd.f32 %v193, %v1131
    %v1137 = vadd.f32 %v194, %v1133
    %v1138 = vtanh.pop %v1136
    %v1139 = vtanh.pop %v1137
    %v1140 = vsub.f32 1.0, %v1113
    %v1141 = vsub.f32 1.0, %v1115
    %1144 = vrot.lane.b32.xlu0 %v1138, 96
    %v1145 = vpop.permute.xlu0 %1144
    %1146 = vrot.lane.b32.xlu0 %v1139, 96
    %v1147 = vpop.permute.xlu0 %1146
    %v1150 = vmul.f32 %v1140, %v1145
    %v1151 = vmul.f32 %v1141, %v1147
    %v1154 = vrot.slane %v1040, 7
    %v1155 = vrot.slane %v1041, 7
    %v1158 = vmul.f32 %v1113, %v1154
    %v1159 = vmul.f32 %v1115, %v1155
    %v1160 = vadd.f32 %v1150, %v1158
    %v1161 = vadd.f32 %v1151, %v1159
    %v1164 = vrot.slane %v1161, 7
    %1165 = vrot.lane.b32.xlu0 %v1160, 96
    %v1166 = vpop.permute.xlu0 %1165
    %1167 = vrot.lane.b32.xlu0 %v1164, 96
    %v1168 = vpop.permute.xlu0 %1167
    %vm1171 = vcmask 261127
    %1172 = vst.msk [vmem:[#allocation2 - $0x7] sm:$0x80] %vm1171, %v1166
    %vm1173 = vcmask 253952
    %1174 = vst.msk [vmem:[#allocation2 + $0x1] sm:$0x1] %vm1173, %v1168
    // Predicated region
    $region38: #{tpu_custom_call.1} parent=1 // pred_check
      %p1175 = pneg %p63
    $region39: #{tpu_custom_call.1} parent=1 // pred_check_branch
      %1177 = sbr.rel (%p1175) target = $region41
    $region40: #{tpu_custom_call.1} parent=1 // pred_region
      %1178 = vst.msk [vmem:[#allocation10 - $0x7] sm:$0x80] %vm1171, %v1166
      %1179 = vst.msk [vmem:[#allocation10 + $0x1] sm:$0x1] %vm1173, %v1168
    $region41: #{tpu_custom_call.1} parent=1 // pred_fallthru
      _
    // Predicated region
    $region42: #{tpu_custom_call.1} parent=1 // pred_check
      _
    $region43: #{tpu_custom_call.1} parent=1 // pred_check_branch
      %1181 = sbr.rel (0) target = $region45
    $region44: #{tpu_custom_call.1} parent=1 // pred_region
      %s1183 = ssub.s32 32, 32
      %1184 = vsyncadd [#allocation6], %s1183
      %s1186 = sshll.u32 [#allocation10], 4
      %s1187 = int_to_ptr.vmem [resolvable:$true] %s1186
      %1189 = dma.vmem_to_hbm [thread:$0]  %s1187, 32, %s5, [#allocation6]
    $region45: #{tpu_custom_call.1} parent=1 // pred_fallthru
      _
    // Predicated region
    $region46: #{tpu_custom_call.1} parent=1 // pred_check
      _
    $region47: #{tpu_custom_call.1} parent=1 // pred_check_branch
      %1191 = sbr.rel (0) target = $region49
    $region48: #{tpu_custom_call.1} parent=1 // pred_region
      %1192 = dma.done [#allocation6], 32
    $region49: #{tpu_custom_call.1} parent=1 // pred_fallthru
      _
    %1193 = vsyncpa [#allocation5], 1
    %1194 = vsyncpa [#allocation8], 1
    %1195 = vsyncpa [#allocation6], 1

</llo_original>
